<compile_context>
chip_gen: v6e
topology: v6e:2x2x1
jax: 0.10.0
libtpu: 0.0.40
codegen_flags: <defaults>
</compile_context>

<pallas_src>
import numpy as np

import jax
import jax.numpy as jnp
from jax.experimental import pallas as pl
from jax.experimental.pallas import tpu as pltpu


_HPAD = 8    # zero halo rows above (and below) each image inside the flat slab
_HEXT = 16   # total extra rows per image (8 above + 8 below) -> 8-aligned interior stores


# ------------------------------ fused Pallas kernel ------------------------------


def _tfn_fused_kernel(x_ref, text_ref, wpack_ref, fpack_ref, mpack_ref,
                      o_ref, xslab_ref):
    f32, bf16 = jnp.float32, jnp.bfloat16

    B, H, Lin = x_ref.shape          # channels-last rows, Lin = W*C_in
    L = wpack_ref.shape[1]           # hidden lane width = W*C_hidden (128)
    blk = H + _HEXT                  # rows per image in the flat slab
    TOT = B * blk                    # total slab rows = conv matmul M

    # static row offsets inside the packed weight buffer
    o_b1 = 0                         # conv1 bands     [3*Lin, L]
    o_b2 = o_b1 + 3 * Lin            # conv2 bands     [3*L,   L]
    o_b3 = o_b2 + 3 * L              # conv3 bands     [3*L,   L]
    o_ms = o_b3 + 3 * L              # misc bias rows  [8,     L]
    o_fc = o_ms + 8                  # GAP-folded FC   [L,     L]

    misc = wpack_ref[o_ms:o_ms + 8, :]                       # [8, L] bf16
    b1row, b2row, b3row, fcb_row = misc[0:1], misc[1:2], misc[2:3], misc[3:4]

    # interior-row mask: 1.0 on image rows, 0.0 on halo rows (keeps the vertical zero
    # padding intact between convs without re-zeroing any scratch).
    rm = jax.lax.broadcasted_iota(jnp.int32, (TOT, 1), 0) % blk
    interior = jnp.logical_and(rm >= _HPAD, rm < _HPAD + H).astype(f32)

    # stage the raw input into the H-padded slab (aligned stores, zero halos everywhere
    # so rolled reads never see uninitialized VMEM).
    xslab_ref[...] = jnp.zeros_like(xslab_ref)
    for b in range(B):
        r0 = b * blk + _HPAD
        xslab_ref[r0:r0 + H, :] = x_ref[b]
    xs = xslab_ref[...]                                      # [TOT, Lin] f32

    def shift_up(a):   # out[r] = a[r-1]   (wrap rows land on zero halos)
        return pltpu.roll(a, 1, 0)

    def shift_dn(a):   # out[r] = a[r+1]
        return pltpu.roll(a, TOT - 1, 0)

    # ---- audio ResNet stem: conv3x3 + relu (3 small K=Lin dots, results rolled) ----
    xsb = xs.astype(bf16)
    t0 = jnp.dot(xsb, wpack_ref[o_b1:o_b1 + Lin, :], preferred_element_type=f32)
    t1 = jnp.dot(xsb, wpack_ref[o_b1 + Lin:o_b1 + 2 * Lin, :], preferred_element_type=f32)
    t2 = jnp.dot(xsb, wpack_ref[o_b1 + 2 * Lin:o_b1 + 3 * Lin, :], preferred_element_type=f32)
    pre1 = shift_up(t0) + t1 + shift_dn(t2)                  # vertical taps realigned on XLU
    h1 = jnp.maximum(pre1 + b1row, 0.0) * interior           # [TOT, L] f32, zero halos

    def conv3x3(a, row_off, brow):
        """3x3 'same' conv on the whole slab as ONE K=3L bf16 MXU matmul."""
        up = shift_up(a).astype(bf16)
        ce = a.astype(bf16)
        dn = shift_dn(a).astype(bf16)
        cat = jnp.concatenate([up, ce, dn], axis=-1)          # [TOT, 3L], lane-aligned
        band = wpack_ref[row_off:row_off + 3 * L, :]          # [3L, L] bf16
        return jnp.dot(cat, band, preferred_element_type=f32) + brow

    # ---- residual block: relu(conv(relu(conv(h1))) + h1) ---------------------------
    h2 = jnp.maximum(conv3x3(h1, o_b2, b2row), 0.0) * interior
    h3 = jnp.maximum(conv3x3(h2, o_b3, b3row) + h1, 0.0) * interior

    # ---- global average pool + FC + relu (pool folded into fc weights) -------------
    s = jnp.concatenate(
        [jnp.sum(h3[b * blk:(b + 1) * blk, :], axis=0, keepdims=True)
         for b in range(B)], axis=0)                          # [B, L]
    fcw = wpack_ref[o_fc:o_fc + L, :]                         # [L, L] bf16 (cols >= Da are 0)
    audio_h = jnp.maximum(
        jnp.dot(s.astype(bf16), fcw, preferred_element_type=f32) + fcb_row, 0.0)   # [B, L]

    # ---- TFN fusion: one [B,Dt]x[Dt,A1*P] matmul + (A1-1) VPU FMAs -----------------
    Dt = text_ref.shape[1]
    P = mpack_ref.shape[1]
    A1 = fpack_ref.shape[1] // P
    text = text_ref[...].astype(bf16)
    G = (jnp.dot(text, fpack_ref[0:Dt, :], preferred_element_type=f32)
         + fpack_ref[Dt:Dt + 1, :])                           # [B, A1*P]
    pre = G[:, 0:P]                                           # "ones" row of a1
    for i in range(1, A1):
        pre = pre + audio_h[:, i - 1:i] * G[:, i * P:(i + 1) * P]
    hf1 = jnp.maximum(pre + fpack_ref[Dt + 1:Dt + 2, 0:P], 0.0)   # [B, P]

    # ---- post-fusion MLP tail (tiny, kept in f32) -----------------------------------
    hf2 = jnp.maximum(
        jnp.dot(hf1, mpack_ref[0:P, :], preferred_element_type=f32)
        + mpack_ref[P:P + 1, :], 0.0)
    logit = (jnp.sum(hf2 * mpack_ref[P + 1:P + 2, :], axis=-1, keepdims=True)
             + mpack_ref[P + 2:P + 3, 0:1])
    o_ref[...] = jax.nn.sigmoid(logit) * 6.0 - 3.0            # score in [-3, 3]


# ------------------------------ host-side wrapper ---------------------------------


@jax.jit
def tfn_model_forward(kparams, audio_in, text_in):
    """audio_in: [B, C_in, H, W] (NCHW); text_in: [B, Dt] -> [B, 1] score in [-3, 3]."""
    B, Cin, H, W = audio_in.shape
    Lin = W * Cin
    L = kparams["wpack"].shape[1]
    TOT = B * (H + _HEXT)

    # minimal layout glue: NCHW -> channels-last rows (no padded HBM copy; the kernel
    # stages this into its own H-padded VMEM slab).
    x = jnp.transpose(audio_in, (0, 2, 3, 1)).reshape(B, H, Lin).astype(jnp.float32)

    args = (x, text_in.astype(jnp.float32),
            kparams["wpack"], kparams["fpack"], kparams["mpack"])

    AP = kparams["fpack"].shape[1]        # A1 * P
    P = kparams["mpack"].shape[1]
    Dt = text_in.shape[1]
    flops = (2 * TOT * (3 * Lin) * L          # stem conv
             + 2 * 2 * TOT * (3 * L) * L      # residual block convs (K=3L each)
             + 2 * B * L * L                  # GAP-folded FC
             + 2 * B * Dt * AP                # fusion matmul
             + 2 * B * P * P)                 # post-fusion MLP
    bytes_accessed = sum(int(a.size) * a.dtype.itemsize for a in args) + B * 4

    vmem = pl.BlockSpec(memory_space=pltpu.MemorySpace.VMEM)
    return pl.pallas_call(
        _tfn_fused_kernel,
        out_shape=jax.ShapeDtypeStruct((B, 1), jnp.float32),
        in_specs=[vmem] * len(args),
        out_specs=vmem,
        scratch_shapes=[pltpu.VMEM((TOT, Lin), jnp.float32)],
        cost_estimate=pl.CostEstimate(flops=flops, transcendentals=B,
                                      bytes_accessed=bytes_accessed),
    )(*args)


# ------------------------- parameters & kernel-side layout -------------------------


def init_params(key, c_in=1, c_hidden=8, audio_dim=8, text_dim=16, post_dim=32):
    ks = jax.random.split(key, 16)

    def w(k, shape, fan_in):
        return jax.random.normal(k, shape, jnp.float32) / jnp.sqrt(float(fan_in))

    a1, t1 = audio_dim + 1, text_dim + 1
    return {
        # conv weights stored HWIO: [3, 3, Cin, Cout]
        "conv1_w": w(ks[0], (3, 3, c_in, c_hidden), 9 * c_in),
        "conv1_b": 0.1 * jax.random.normal(ks[7], (c_hidden,), jnp.float32),
        "conv2_w": w(ks[1], (3, 3, c_hidden, c_hidden), 9 * c_hidden),
        "conv2_b": 0.1 * jax.random.normal(ks[8], (c_hidden,), jnp.float32),
        "conv3_w": w(ks[2], (3, 3, c_hidden, c_hidden), 9 * c_hidden),
        "conv3_b": 0.1 * jax.random.normal(ks[9], (c_hidden,), jnp.float32),
        "fc_w": w(ks[3], (c_hidden, audio_dim), c_hidden),
        "fc_b": 0.1 * jax.random.normal(ks[10], (audio_dim,), jnp.float32),
        # TFN post-fusion MLP; pf1_w kept as [A1, T1, P]
        "pf1_w": w(ks[4], (a1, t1, post_dim), a1 * t1),
        "pf1_b": 0.1 * jax.random.normal(ks[11], (post_dim,), jnp.float32),
        "pf2_w": w(ks[5], (post_dim, post_dim), post_dim),
        "pf2_b": 0.1 * jax.random.normal(ks[12], (post_dim,), jnp.float32),
        "pf3_w": w(ks[6], (post_dim, 1), post_dim),
        "pf3_b": 0.1 * jax.random.normal(ks[13], (1,), jnp.float32),
    }


def prepare_kernel_params(params, H, W):
    """One-time weight re-layout + bf16 packing for the fused kernel (plain numpy)."""
    conv1_w = np.asarray(params["conv1_w"], np.float32)
    conv2_w = np.asarray(params["conv2_w"], np.float32)
    conv3_w = np.asarray(params["conv3_w"], np.float32)
    Cin, Ch = conv1_w.shape[2], conv1_w.shape[3]
    Lin, L = W * Cin, W * Ch
    assert H % 8 == 0, "slab layout assumes H is a multiple of 8"
    assert Lin % 8 == 0, "W*C_in must be a multiple of 8 for aligned band slices"
    assert L % 128 == 0, "W*C_hidden must be a multiple of 128 (lane-dense activations)"

    def bands_of(w_hwio):
        # band[di][j2*ci + c_in, j*co + c_out] = w[di, dj, c_in, c_out], j2 = j + dj - 1;
        # the 3 horizontal taps + W zero padding are folded into one banded matrix, and
        # the 3 vertical taps are stacked along K for a single conv matmul.
        KH, KW, ci, co = w_hwio.shape
        M = np.zeros((KH, W * ci, W * co), np.float32)
        for di in range(KH):
            for dj in range(KW):
                off = dj - 1
                for j in range(W):
                    j2 = j + off
                    if 0 <= j2 < W:
                        M[di, j2 * ci:(j2 + 1) * ci, j * co:(j + 1) * co] = w_hwio[di, dj]
        return M.reshape(KH * W * ci, W * co)

    misc = np.zeros((8, L), np.float32)
    misc[0] = np.tile(np.asarray(params["conv1_b"]), W)
    misc[1] = np.tile(np.asarray(params["conv2_b"]), W)
    misc[2] = np.tile(np.asarray(params["conv3_b"]), W)
    fc_b = np.asarray(params["fc_b"], np.float32)
    Da = fc_b.shape[0]
    misc[3, :Da] = fc_b

    # GAP folded into the FC: feat @ fc_w == (sum_h act) @ (tile(fc_w) / (H*W));
    # output columns padded to L so the FC result stays lane-dense.
    fc_comb = np.zeros((L, L), np.float32)
    fc_comb[:, :Da] = np.tile(np.asarray(params["fc_w"], np.float32), (W, 1)) / float(H * W)

    wpack = np.concatenate([bands_of(conv1_w), bands_of(conv2_w), bands_of(conv3_w),
                            misc, fc_comb], axis=0)          # [3*Lin + 6*L + 8 + L, L]

    # fusion pack: pf1_w[:, 1:, :] flattened to [Dt, A1*P] for a single matmul, plus the
    # "ones" row of the fusion weight and the pf1 bias.
    pf1_w = np.asarray(params["pf1_w"], np.float32)          # [A1, Dt+1, P]
    A1, T1, P = pf1_w.shape
    Dt = T1 - 1
    fpack = np.zeros((Dt + 8, A1 * P), np.float32)
    fpack[:Dt] = np.transpose(pf1_w[:, 1:, :], (1, 0, 2)).reshape(Dt, A1 * P)
    fpack[Dt] = pf1_w[:, 0, :].reshape(A1 * P)
    fpack[Dt + 1, :P] = np.asarray(params["pf1_b"], np.float32)

    # tiny post-fusion tail (kept f32: ~5 KB, negligible traffic, best output accuracy)
    mpack = np.zeros((P + 8, P), np.float32)
    mpack[:P] = np.asarray(params["pf2_w"], np.float32)
    mpack[P] = np.asarray(params["pf2_b"], np.float32)
    mpack[P + 1] = np.asarray(params["pf3_w"], np.float32)[:, 0]
    mpack[P + 2, 0] = float(np.asarray(params["pf3_b"], np.float32)[0])

    return {"wpack": jnp.asarray(wpack, jnp.bfloat16),
            "fpack": jnp.asarray(fpack, jnp.bfloat16),
            "mpack": jnp.asarray(mpack, jnp.float32)}


# ------------------------- plain-JAX reference (validation) ------------------------


def reference_forward(params, audio_in, text_in):
    """Non-Pallas forward pass with identical semantics, used only to check the kernel."""
    B = audio_in.shape[0]
    hp = jax.lax.Precision.HIGHEST
    x = jnp.transpose(audio_in, (0, 2, 3, 1))          # NHWC

    def conv3x3(h, w, b):
        y = jax.lax.conv_general_dilated(
            h, w, window_strides=(1, 1), padding="SAME",
            dimension_numbers=("NHWC", "HWIO", "NHWC"), precision=hp)
        return y + b[None, None, None, :]

    h1 = jax.nn.relu(conv3x3(x, params["conv1_w"], params["conv1_b"]))
    h2 = jax.nn.relu(conv3x3(h1, params["conv2_w"], params["conv2_b"]))
    h3 = jax.nn.relu(conv3x3(h2, params["conv3_w"], params["conv3_b"]) + h1)
    feat = jnp.mean(h3, axis=(1, 2))
    audio_h = jax.nn.relu(jnp.dot(feat, params["fc_w"], precision=hp) + params["fc_b"])

    ones = jnp.ones((B, 1), jnp.float32)
    a1 = jnp.concatenate([ones, audio_h], axis=1)
    t1 = jnp.concatenate([ones, text_in], axis=1)
    fusion = (a1[:, :, None] * t1[:, None, :]).reshape(B, -1)
    w1 = params["pf1_w"].reshape(-1, params["pf1_w"].shape[-1])
    hf1 = jax.nn.relu(jnp.dot(fusion, w1, precision=hp) + params["pf1_b"])
    hf2 = jax.nn.relu(jnp.dot(hf1, params["pf2_w"], precision=hp) + params["pf2_b"])
    logit = jnp.dot(hf2, params["pf3_w"], precision=hp) + params["pf3_b"]
    return jax.nn.sigmoid(logit) * 6.0 - 3.0


# ---------------------------------------- main -------------------------------------

if __name__ == "__main__":
    key = jax.random.PRNGKey(0)
    k_param, k_audio, k_text = jax.random.split(key, 3)

    B, C_IN, H, W = 2, 1, 16, 16
    C_HIDDEN, AUDIO_DIM, TEXT_DIM, POST_DIM = 8, 8, 16, 32

    params = init_params(k_param, c_in=C_IN, c_hidden=C_HIDDEN,
                         audio_dim=AUDIO_DIM, text_dim=TEXT_DIM, post_dim=POST_DIM)
    kparams = prepare_kernel_params(params, H, W)

    audio_in = jax.random.normal(k_audio, (B, C_IN, H, W), jnp.float32)   # NCHW
    text_in = jax.random.normal(k_text, (B, TEXT_DIM), jnp.float32)

    out = jax.block_until_ready(tfn_model_forward(kparams, audio_in, text_in))
    assert out.shape == (B, 1), out.shape

    ref = jax.block_until_ready(reference_forward(params, audio_in, text_in))
    max_err = float(jnp.max(jnp.abs(out - ref)))
    # bf16 weights + bf16 matmul LHS with f32 accumulation: expect O(1e-3..1e-2) abs error.
    assert max_err < 3e-2, f"fused kernel mismatch vs reference: max abs err {max_err}"

    print("KERNEL_OK")
</pallas_src>

<mosaic_0001>
module attributes {stable_mosaic.version = 11 : i64} {
  func.func @_tfn_fused_kernel(%arg0: memref<2x16x16xf32, #tpu.memory_space<vmem>>, %arg1: memref<2x16xf32, #tpu.memory_space<vmem>>, %arg2: memref<952x128xbf16, #tpu.memory_space<vmem>>, %arg3: memref<24x288xbf16, #tpu.memory_space<vmem>>, %arg4: memref<40x32xf32, #tpu.memory_space<vmem>>, %arg5: memref<2x1xf32, #tpu.memory_space<vmem>>, %arg6: memref<64x16xf32, #tpu.memory_space<vmem>>) attributes {dimension_semantics = [], scalar_prefetch = 0 : i64, scratch_operands = 1 : i64, tpu.core_type = #tpu.core_type<tc>} {
    %c816 = arith.constant 816 : index
    %c0 = arith.constant 0 : index
    %0 = vector.load %arg2[%c816, %c0] : memref<952x128xbf16, #tpu.memory_space<vmem>>, vector<8x128xbf16>
    %1 = vector.extract_strided_slice %0 {offsets = [0, 0], sizes = [1, 128], strides = [1, 1]} : vector<8x128xbf16> to vector<1x128xbf16>
    %2 = vector.extract_strided_slice %0 {offsets = [1, 0], sizes = [1, 128], strides = [1, 1]} : vector<8x128xbf16> to vector<1x128xbf16>
    %3 = vector.extract_strided_slice %0 {offsets = [2, 0], sizes = [1, 128], strides = [1, 1]} : vector<8x128xbf16> to vector<1x128xbf16>
    %4 = vector.extract_strided_slice %0 {offsets = [3, 0], sizes = [1, 128], strides = [1, 1]} : vector<8x128xbf16> to vector<1x128xbf16>
    %5 = tpu.iota {dimensions = array<i32: 0>} : vector<64x1xi32>
    %c32_i32 = arith.constant 32 : i32
    %c0_i32 = arith.constant 0 : i32
    %6 = arith.cmpi eq, %c32_i32, %c0_i32 : i32
    %c1_i32 = arith.constant 1 : i32
    %7 = arith.select %6, %c1_i32, %c32_i32 : i32
    %8 = vector.broadcast %7 : i32 to vector<64x1xi32>
    %9 = arith.remsi %5, %8 : vector<64x1xi32>
    %c0_i32_0 = arith.constant 0 : i32
    %10 = vector.broadcast %c0_i32_0 : i32 to vector<64x1xi32>
    %11 = arith.cmpi ne, %9, %10 : vector<64x1xi32>
    %c0_i32_1 = arith.constant 0 : i32
    %12 = vector.broadcast %c0_i32_1 : i32 to vector<64x1xi32>
    %13 = arith.cmpi slt, %9, %12 : vector<64x1xi32>
    %c0_i32_2 = arith.constant 0 : i32
    %14 = arith.cmpi slt, %7, %c0_i32_2 : i32
    %15 = vector.broadcast %14 : i1 to vector<64x1xi1>
    %16 = vector.broadcast %15 : vector<64x1xi1> to vector<64x1xi1>
    %17 = arith.xori %13, %16 : vector<64x1xi1>
    %18 = arith.andi %17, %11 : vector<64x1xi1>
    %19 = vector.broadcast %7 : i32 to vector<64x1xi32>
    %20 = arith.addi %9, %19 : vector<64x1xi32>
    %21 = arith.select %18, %20, %9 : vector<64x1xi1>, vector<64x1xi32>
    %c8_i32 = arith.constant 8 : i32
    %22 = vector.broadcast %c8_i32 : i32 to vector<64x1xi32>
    %23 = arith.cmpi sge, %21, %22 : vector<64x1xi32>
    %c24_i32 = arith.constant 24 : i32
    %24 = vector.broadcast %c24_i32 : i32 to vector<64x1xi32>
    %25 = arith.cmpi slt, %21, %24 : vector<64x1xi32>
    %26 = arith.andi %23, %25 : vector<64x1xi1>
    %27 = arith.extui %26 : vector<64x1xi1> to vector<64x1xi32>
    %28 = arith.sitofp %27 : vector<64x1xi32> to vector<64x1xf32>
    %cst = arith.constant 0.000000e+00 : f32
    %29 = vector.broadcast %cst : f32 to vector<64x16xf32>
    %c0_3 = arith.constant 0 : index
    %c0_4 = arith.constant 0 : index
    %30 = vector.load %arg6[%c0_3, %c0_4] : memref<64x16xf32, #tpu.memory_space<vmem>>, vector<64x16xf32>
    tpu.vector_store %arg6[%c0_3, %c0_4], %29 {strides = array<i32>} : memref<64x16xf32, #tpu.memory_space<vmem>>, vector<64x16xf32>,
    %c0_5 = arith.constant 0 : index
    %c0_6 = arith.constant 0 : index
    %c0_7 = arith.constant 0 : index
    %31 = vector.load %arg0[%c0_5, %c0_6, %c0_7] : memref<2x16x16xf32, #tpu.memory_space<vmem>>, vector<1x16x16xf32>
    %32 = vector.shape_cast %31 : vector<1x16x16xf32> to vector<16x16xf32>
    %c8 = arith.constant 8 : index
    %c0_8 = arith.constant 0 : index
    %33 = vector.load %arg6[%c8, %c0_8] : memref<64x16xf32, #tpu.memory_space<vmem>>, vector<16x16xf32>
    tpu.vector_store %arg6[%c8, %c0_8], %32 {strides = array<i32>} : memref<64x16xf32, #tpu.memory_space<vmem>>, vector<16x16xf32>,
    %c1 = arith.constant 1 : index
    %c0_9 = arith.constant 0 : index
    %c0_10 = arith.constant 0 : index
    %34 = vector.load %arg0[%c1, %c0_9, %c0_10] : memref<2x16x16xf32, #tpu.memory_space<vmem>>, vector<1x16x16xf32>
    %35 = vector.shape_cast %34 : vector<1x16x16xf32> to vector<16x16xf32>
    %c40 = arith.constant 40 : index
    %c0_11 = arith.constant 0 : index
    %36 = vector.load %arg6[%c40, %c0_11] : memref<64x16xf32, #tpu.memory_space<vmem>>, vector<16x16xf32>
    tpu.vector_store %arg6[%c40, %c0_11], %35 {strides = array<i32>} : memref<64x16xf32, #tpu.memory_space<vmem>>, vector<16x16xf32>,
    %c0_12 = arith.constant 0 : index
    %c0_13 = arith.constant 0 : index
    %37 = vector.load %arg6[%c0_12, %c0_13] : memref<64x16xf32, #tpu.memory_space<vmem>>, vector<64x16xf32>
    %38 = arith.truncf %37 : vector<64x16xf32> to vector<64x16xbf16>
    %c0_14 = arith.constant 0 : index
    %c0_15 = arith.constant 0 : index
    %39 = vector.load %arg2[%c0_14, %c0_15] : memref<952x128xbf16, #tpu.memory_space<vmem>>, vector<16x128xbf16>
    %cst_16 = arith.constant dense<0.000000e+00> : vector<64x128xf32>
    %40 = tpu.matmul %38, %39, %cst_16 {dimension_numbers = #tpu.dot_dimension_numbers<[1], [0], [0], [1], [0, 0, 1, 1], [], []>} : vector<64x16xbf16>, vector<16x128xbf16>, vector<64x128xf32> -> vector<64x128xf32>
    %c16 = arith.constant 16 : index
    %c0_17 = arith.constant 0 : index
    %41 = vector.load %arg2[%c16, %c0_17] : memref<952x128xbf16, #tpu.memory_space<vmem>>, vector<16x128xbf16>
    %cst_18 = arith.constant dense<0.000000e+00> : vector<64x128xf32>
    %42 = tpu.matmul %38, %41, %cst_18 {dimension_numbers = #tpu.dot_dimension_numbers<[1], [0], [0], [1], [0, 0, 1, 1], [], []>} : vector<64x16xbf16>, vector<16x128xbf16>, vector<64x128xf32> -> vector<64x128xf32>
    %c32 = arith.constant 32 : index
    %c0_19 = arith.constant 0 : index
    %43 = vector.load %arg2[%c32, %c0_19] : memref<952x128xbf16, #tpu.memory_space<vmem>>, vector<16x128xbf16>
    %cst_20 = arith.constant dense<0.000000e+00> : vector<64x128xf32>
    %44 = tpu.matmul %38, %43, %cst_20 {dimension_numbers = #tpu.dot_dimension_numbers<[1], [0], [0], [1], [0, 0, 1, 1], [], []>} : vector<64x16xbf16>, vector<16x128xbf16>, vector<64x128xf32> -> vector<64x128xf32>
    %c1_i32_21 = arith.constant 1 : i32
    %45 = tpu.dynamic_rotate %40 by %c1_i32_21 dim 0 : vector<64x128xf32>, i32 -> vector<64x128xf32>
    %46 = arith.addf %45, %42 : vector<64x128xf32>
    %c63_i32 = arith.constant 63 : i32
    %47 = tpu.dynamic_rotate %44 by %c63_i32 dim 0 : vector<64x128xf32>, i32 -> vector<64x128xf32>
    %48 = arith.addf %46, %47 : vector<64x128xf32>
    %49 = arith.extf %1 : vector<1x128xbf16> to vector<1x128xf32>
    %50 = vector.broadcast %49 : vector<1x128xf32> to vector<64x128xf32>
    %51 = arith.addf %48, %50 : vector<64x128xf32>
    %cst_22 = arith.constant 0.000000e+00 : f32
    %52 = vector.broadcast %cst_22 : f32 to vector<64x128xf32>
    %53 = arith.maximumf %51, %52 : vector<64x128xf32>
    %54 = vector.broadcast %28 : vector<64x1xf32> to vector<64x128xf32>
    %55 = arith.mulf %53, %54 : vector<64x128xf32>
    %c1_i32_23 = arith.constant 1 : i32
    %56 = tpu.dynamic_rotate %55 by %c1_i32_23 dim 0 : vector<64x128xf32>, i32 -> vector<64x128xf32>
    %57 = arith.truncf %56 : vector<64x128xf32> to vector<64x128xbf16>
    %58 = arith.truncf %55 : vector<64x128xf32> to vector<64x128xbf16>
    %c63_i32_24 = arith.constant 63 : i32
    %59 = tpu.dynamic_rotate %55 by %c63_i32_24 dim 0 : vector<64x128xf32>, i32 -> vector<64x128xf32>
    %60 = arith.truncf %59 : vector<64x128xf32> to vector<64x128xbf16>
    %61 = tpu.concatenate %57, %58, %60 in 1 : vector<64x128xbf16>, vector<64x128xbf16>, vector<64x128xbf16> -> vector<64x384xbf16>
    %c48 = arith.constant 48 : index
    %c0_25 = arith.constant 0 : index
    %62 = vector.load %arg2[%c48, %c0_25] : memref<952x128xbf16, #tpu.memory_space<vmem>>, vector<384x128xbf16>
    %cst_26 = arith.constant dense<0.000000e+00> : vector<64x128xf32>
    %63 = tpu.matmul %61, %62, %cst_26 {dimension_numbers = #tpu.dot_dimension_numbers<[1], [0], [0], [1], [0, 0, 1, 1], [], []>} : vector<64x384xbf16>, vector<384x128xbf16>, vector<64x128xf32> -> vector<64x128xf32>
    %64 = arith.extf %2 : vector<1x128xbf16> to vector<1x128xf32>
    %65 = vector.broadcast %64 : vector<1x128xf32> to vector<64x128xf32>
    %66 = arith.addf %63, %65 : vector<64x128xf32>
    %cst_27 = arith.constant 0.000000e+00 : f32
    %67 = vector.broadcast %cst_27 : f32 to vector<64x128xf32>
    %68 = arith.maximumf %66, %67 : vector<64x128xf32>
    %69 = vector.broadcast %28 : vector<64x1xf32> to vector<64x128xf32>
    %70 = arith.mulf %68, %69 : vector<64x128xf32>
    %c1_i32_28 = arith.constant 1 : i32
    %71 = tpu.dynamic_rotate %70 by %c1_i32_28 dim 0 : vector<64x128xf32>, i32 -> vector<64x128xf32>
    %72 = arith.truncf %71 : vector<64x128xf32> to vector<64x128xbf16>
    %73 = arith.truncf %70 : vector<64x128xf32> to vector<64x128xbf16>
    %c63_i32_29 = arith.constant 63 : i32
    %74 = tpu.dynamic_rotate %70 by %c63_i32_29 dim 0 : vector<64x128xf32>, i32 -> vector<64x128xf32>
    %75 = arith.truncf %74 : vector<64x128xf32> to vector<64x128xbf16>
    %76 = tpu.concatenate %72, %73, %75 in 1 : vector<64x128xbf16>, vector<64x128xbf16>, vector<64x128xbf16> -> vector<64x384xbf16>
    %c432 = arith.constant 432 : index
    %c0_30 = arith.constant 0 : index
    %77 = vector.load %arg2[%c432, %c0_30] : memref<952x128xbf16, #tpu.memory_space<vmem>>, vector<384x128xbf16>
    %cst_31 = arith.constant dense<0.000000e+00> : vector<64x128xf32>
    %78 = tpu.matmul %76, %77, %cst_31 {dimension_numbers = #tpu.dot_dimension_numbers<[1], [0], [0], [1], [0, 0, 1, 1], [], []>} : vector<64x384xbf16>, vector<384x128xbf16>, vector<64x128xf32> -> vector<64x128xf32>
    %79 = arith.extf %3 : vector<1x128xbf16> to vector<1x128xf32>
    %80 = vector.broadcast %79 : vector<1x128xf32> to vector<64x128xf32>
    %81 = arith.addf %78, %80 : vector<64x128xf32>
    %82 = arith.addf %81, %55 : vector<64x128xf32>
    %cst_32 = arith.constant 0.000000e+00 : f32
    %83 = vector.broadcast %cst_32 : f32 to vector<64x128xf32>
    %84 = arith.maximumf %82, %83 : vector<64x128xf32>
    %85 = vector.broadcast %28 : vector<64x1xf32> to vector<64x128xf32>
    %86 = arith.mulf %84, %85 : vector<64x128xf32>
    %87 = vector.extract_strided_slice %86 {offsets = [0, 0], sizes = [32, 128], strides = [1, 1]} : vector<64x128xf32> to vector<32x128xf32>
    %cst_33 = arith.constant dense<0.000000e+00> : vector<128xf32>
    %88 = vector.multi_reduction <add>, %87, %cst_33 [0] : vector<32x128xf32> to vector<128xf32>
    %89 = vector.shape_cast %88 : vector<128xf32> to vector<1x128xf32>
    %90 = vector.extract_strided_slice %86 {offsets = [32, 0], sizes = [32, 128], strides = [1, 1]} : vector<64x128xf32> to vector<32x128xf32>
    %cst_34 = arith.constant dense<0.000000e+00> : vector<128xf32>
    %91 = vector.multi_reduction <add>, %90, %cst_34 [0] : vector<32x128xf32> to vector<128xf32>
    %92 = vector.shape_cast %91 : vector<128xf32> to vector<1x128xf32>
    %93 = tpu.concatenate %89, %92 in 0 : vector<1x128xf32>, vector<1x128xf32> -> vector<2x128xf32>
    %c824 = arith.constant 824 : index
    %c0_35 = arith.constant 0 : index
    %94 = vector.load %arg2[%c824, %c0_35] : memref<952x128xbf16, #tpu.memory_space<vmem>>, vector<128x128xbf16>
    %95 = arith.truncf %93 : vector<2x128xf32> to vector<2x128xbf16>
    %cst_36 = arith.constant dense<0.000000e+00> : vector<2x128xf32>
    %96 = tpu.matmul %95, %94, %cst_36 {dimension_numbers = #tpu.dot_dimension_numbers<[1], [0], [0], [1], [0, 0, 1, 1], [], []>} : vector<2x128xbf16>, vector<128x128xbf16>, vector<2x128xf32> -> vector<2x128xf32>
    %97 = arith.extf %4 : vector<1x128xbf16> to vector<1x128xf32>
    %98 = vector.broadcast %97 : vector<1x128xf32> to vector<2x128xf32>
    %99 = arith.addf %96, %98 : vector<2x128xf32>
    %cst_37 = arith.constant 0.000000e+00 : f32
    %100 = vector.broadcast %cst_37 : f32 to vector<2x128xf32>
    %101 = arith.maximumf %99, %100 : vector<2x128xf32>
    %c0_38 = arith.constant 0 : index
    %c0_39 = arith.constant 0 : index
    %102 = vector.load %arg1[%c0_38, %c0_39] : memref<2x16xf32, #tpu.memory_space<vmem>>, vector<2x16xf32>
    %103 = arith.truncf %102 : vector<2x16xf32> to vector<2x16xbf16>
    %c0_40 = arith.constant 0 : index
    %c0_41 = arith.constant 0 : index
    %104 = vector.load %arg3[%c0_40, %c0_41] : memref<24x288xbf16, #tpu.memory_space<vmem>>, vector<16x288xbf16>
    %cst_42 = arith.constant dense<0.000000e+00> : vector<2x288xf32>
    %105 = tpu.matmul %103, %104, %cst_42 {dimension_numbers = #tpu.dot_dimension_numbers<[1], [0], [0], [1], [0, 0, 1, 1], [], []>} : vector<2x16xbf16>, vector<16x288xbf16>, vector<2x288xf32> -> vector<2x288xf32>
    %c16_43 = arith.constant 16 : index
    %c0_44 = arith.constant 0 : index
    %106 = vector.load %arg3[%c16_43, %c0_44] : memref<24x288xbf16, #tpu.memory_space<vmem>>, vector<1x288xbf16>
    %107 = arith.extf %106 : vector<1x288xbf16> to vector<1x288xf32>
    %108 = vector.broadcast %107 : vector<1x288xf32> to vector<2x288xf32>
    %109 = arith.addf %105, %108 : vector<2x288xf32>
    %110 = vector.extract_strided_slice %109 {offsets = [0, 0], sizes = [2, 32], strides = [1, 1]} : vector<2x288xf32> to vector<2x32xf32>
    %111 = vector.extract_strided_slice %101 {offsets = [0, 0], sizes = [2, 1], strides = [1, 1]} : vector<2x128xf32> to vector<2x1xf32>
    %112 = vector.extract_strided_slice %109 {offsets = [0, 32], sizes = [2, 32], strides = [1, 1]} : vector<2x288xf32> to vector<2x32xf32>
    %113 = vector.broadcast %111 : vector<2x1xf32> to vector<2x32xf32>
    %114 = arith.mulf %113, %112 : vector<2x32xf32>
    %115 = arith.addf %110, %114 : vector<2x32xf32>
    %116 = vector.extract_strided_slice %101 {offsets = [0, 1], sizes = [2, 1], strides = [1, 1]} : vector<2x128xf32> to vector<2x1xf32>
    %117 = vector.extract_strided_slice %109 {offsets = [0, 64], sizes = [2, 32], strides = [1, 1]} : vector<2x288xf32> to vector<2x32xf32>
    %118 = vector.broadcast %116 : vector<2x1xf32> to vector<2x32xf32>
    %119 = arith.mulf %118, %117 : vector<2x32xf32>
    %120 = arith.addf %115, %119 : vector<2x32xf32>
    %121 = vector.extract_strided_slice %101 {offsets = [0, 2], sizes = [2, 1], strides = [1, 1]} : vector<2x128xf32> to vector<2x1xf32>
    %122 = vector.extract_strided_slice %109 {offsets = [0, 96], sizes = [2, 32], strides = [1, 1]} : vector<2x288xf32> to vector<2x32xf32>
    %123 = vector.broadcast %121 : vector<2x1xf32> to vector<2x32xf32>
    %124 = arith.mulf %123, %122 : vector<2x32xf32>
    %125 = arith.addf %120, %124 : vector<2x32xf32>
    %126 = vector.extract_strided_slice %101 {offsets = [0, 3], sizes = [2, 1], strides = [1, 1]} : vector<2x128xf32> to vector<2x1xf32>
    %127 = vector.extract_strided_slice %109 {offsets = [0, 128], sizes = [2, 32], strides = [1, 1]} : vector<2x288xf32> to vector<2x32xf32>
    %128 = vector.broadcast %126 : vector<2x1xf32> to vector<2x32xf32>
    %129 = arith.mulf %128, %127 : vector<2x32xf32>
    %130 = arith.addf %125, %129 : vector<2x32xf32>
    %131 = vector.extract_strided_slice %101 {offsets = [0, 4], sizes = [2, 1], strides = [1, 1]} : vector<2x128xf32> to vector<2x1xf32>
    %132 = vector.extract_strided_slice %109 {offsets = [0, 160], sizes = [2, 32], strides = [1, 1]} : vector<2x288xf32> to vector<2x32xf32>
    %133 = vector.broadcast %131 : vector<2x1xf32> to vector<2x32xf32>
    %134 = arith.mulf %133, %132 : vector<2x32xf32>
    %135 = arith.addf %130, %134 : vector<2x32xf32>
    %136 = vector.extract_strided_slice %101 {offsets = [0, 5], sizes = [2, 1], strides = [1, 1]} : vector<2x128xf32> to vector<2x1xf32>
    %137 = vector.extract_strided_slice %109 {offsets = [0, 192], sizes = [2, 32], strides = [1, 1]} : vector<2x288xf32> to vector<2x32xf32>
    %138 = vector.broadcast %136 : vector<2x1xf32> to vector<2x32xf32>
    %139 = arith.mulf %138, %137 : vector<2x32xf32>
    %140 = arith.addf %135, %139 : vector<2x32xf32>
    %141 = vector.extract_strided_slice %101 {offsets = [0, 6], sizes = [2, 1], strides = [1, 1]} : vector<2x128xf32> to vector<2x1xf32>
    %142 = vector.extract_strided_slice %109 {offsets = [0, 224], sizes = [2, 32], strides = [1, 1]} : vector<2x288xf32> to vector<2x32xf32>
    %143 = vector.broadcast %141 : vector<2x1xf32> to vector<2x32xf32>
    %144 = arith.mulf %143, %142 : vector<2x32xf32>
    %145 = arith.addf %140, %144 : vector<2x32xf32>
    %146 = vector.extract_strided_slice %101 {offsets = [0, 7], sizes = [2, 1], strides = [1, 1]} : vector<2x128xf32> to vector<2x1xf32>
    %147 = vector.extract_strided_slice %109 {offsets = [0, 256], sizes = [2, 32], strides = [1, 1]} : vector<2x288xf32> to vector<2x32xf32>
    %148 = vector.broadcast %146 : vector<2x1xf32> to vector<2x32xf32>
    %149 = arith.mulf %148, %147 : vector<2x32xf32>
    %150 = arith.addf %145, %149 : vector<2x32xf32>
    %c17 = arith.constant 17 : index
    %c0_45 = arith.constant 0 : index
    %151 = vector.load %arg3[%c17, %c0_45] : memref<24x288xbf16, #tpu.memory_space<vmem>>, vector<1x32xbf16>
    %152 = arith.extf %151 : vector<1x32xbf16> to vector<1x32xf32>
    %153 = vector.broadcast %152 : vector<1x32xf32> to vector<2x32xf32>
    %154 = arith.addf %150, %153 : vector<2x32xf32>
    %cst_46 = arith.constant 0.000000e+00 : f32
    %155 = vector.broadcast %cst_46 : f32 to vector<2x32xf32>
    %156 = arith.maximumf %154, %155 : vector<2x32xf32>
    %c0_47 = arith.constant 0 : index
    %c0_48 = arith.constant 0 : index
    %157 = vector.load %arg4[%c0_47, %c0_48] : memref<40x32xf32, #tpu.memory_space<vmem>>, vector<32x32xf32>
    %cst_49 = arith.constant dense<0.000000e+00> : vector<2x32xf32>
    %158 = tpu.matmul %156, %157, %cst_49 {dimension_numbers = #tpu.dot_dimension_numbers<[1], [0], [0], [1], [0, 0, 1, 1], [], []>} : vector<2x32xf32>, vector<32x32xf32>, vector<2x32xf32> -> vector<2x32xf32>
    %c32_50 = arith.constant 32 : index
    %c0_51 = arith.constant 0 : index
    %159 = vector.load %arg4[%c32_50, %c0_51] : memref<40x32xf32, #tpu.memory_space<vmem>>, vector<1x32xf32>
    %160 = vector.broadcast %159 : vector<1x32xf32> to vector<2x32xf32>
    %161 = arith.addf %158, %160 : vector<2x32xf32>
    %cst_52 = arith.constant 0.000000e+00 : f32
    %162 = vector.broadcast %cst_52 : f32 to vector<2x32xf32>
    %163 = arith.maximumf %161, %162 : vector<2x32xf32>
    %c33 = arith.constant 33 : index
    %c0_53 = arith.constant 0 : index
    %164 = vector.load %arg4[%c33, %c0_53] : memref<40x32xf32, #tpu.memory_space<vmem>>, vector<1x32xf32>
    %165 = vector.broadcast %164 : vector<1x32xf32> to vector<2x32xf32>
    %166 = arith.mulf %163, %165 : vector<2x32xf32>
    %cst_54 = arith.constant dense<0.000000e+00> : vector<2xf32>
    %167 = vector.multi_reduction <add>, %166, %cst_54 [1] : vector<2x32xf32> to vector<2xf32>
    %168 = vector.shape_cast %167 : vector<2xf32> to vector<2x1xf32>
    %c34 = arith.constant 34 : index
    %c0_55 = arith.constant 0 : index
    %169 = vector.load %arg4[%c34, %c0_55] : memref<40x32xf32, #tpu.memory_space<vmem>>, vector<1x1xf32>
    %170 = vector.broadcast %169 : vector<1x1xf32> to vector<2x1xf32>
    %171 = arith.addf %168, %170 : vector<2x1xf32>
    %172 = arith.negf %171 : vector<2x1xf32>
    %173 = math.exp %172 : vector<2x1xf32>
    %cst_56 = arith.constant 1.000000e+00 : f32
    %174 = vector.broadcast %cst_56 : f32 to vector<2x1xf32>
    %175 = arith.addf %174, %173 : vector<2x1xf32>
    %176 = arith.divf %174, %175 : vector<2x1xf32>
    %cst_57 = arith.constant 6.000000e+00 : f32
    %177 = vector.broadcast %cst_57 : f32 to vector<2x1xf32>
    %178 = arith.mulf %176, %177 : vector<2x1xf32>
    %cst_58 = arith.constant 3.000000e+00 : f32
    %179 = vector.broadcast %cst_58 : f32 to vector<2x1xf32>
    %180 = arith.subf %178, %179 : vector<2x1xf32>
    %c0_59 = arith.constant 0 : index
    %c0_60 = arith.constant 0 : index
    %181 = vector.load %arg5[%c0_59, %c0_60] : memref<2x1xf32, #tpu.memory_space<vmem>>, vector<2x1xf32>
    tpu.vector_store %arg5[%c0_59, %c0_60], %180 {strides = array<i32>} : memref<2x1xf32, #tpu.memory_space<vmem>>, vector<2x1xf32>,
    return
  }
}

</mosaic_0001>

<llo_original>
// kernel: tfn_model_forward.1
$region0: #{tfn_model_forward.1}
  #allocation0 [shape = 'u32[]', space=smem, size = 0x4, offset = 0x4, fixed_abs, tag = 'smem constant byte address 0x4 - core index']
  #allocation1 [shape = 'u32[144,128]{1,0:T(1,128)}', space=vmem, size = 0x12000, scoped, tag = 'internal scratch']
  #allocation2 [shape = 'f32[64,16]{1,0:T(8,128)}', space=vmem, size = 0x8000, scoped, tag = 'scratch operand']
  %s0 = inlined_call_operand.vmem [shape: f32[2,16,16], index: 0, kind: input, shape index: {}]
  %s1 = inlined_call_operand.vmem [shape: f32[2,16], index: 1, kind: input, shape index: {}]
  %s2 = inlined_call_operand.hbm [shape: bf16[952,128], index: 2, kind: input, shape index: {}]
  %s3 = inlined_call_operand.vmem [shape: bf16[24,288], index: 3, kind: input, shape index: {}]
  %s4 = inlined_call_operand.vmem [shape: f32[40,32], index: 4, kind: input, shape index: {}]
  %s5 = inlined_call_operand.vmem [shape: f32[2,1], index: 5, kind: output, shape index: {}]
  %s6 = sld [smem:[#allocation0]]
  $region34: #{tfn_model_forward.1} parent=0
    _
  %s8 = ssub.s32 1, %s6
  %s9 = scalar_select 0, %s8, %s6
  $region1: #{tfn_model_forward.1} parent=0
    #allocation3 [shape = 'u8[243712]{0}', space=vmem, size = 0x3b800, scoped, tag = 'input window, operand 2, single buffered']
    #allocation4 [shape = 's32[1]{0}', space=sflag, size = 0x4, scoped, tag = 'scoped memory for tfn_model_forward.1']
    %10 = vsyncpa [#allocation4], 0
    // Predicated region
    $region2: #{tfn_model_forward.1} parent=1 // pred_check
      _
    $region3: #{tfn_model_forward.1} parent=1 // pred_check_branch
      %12 = sbr.rel (0) target = $region5
    $region4: #{tfn_model_forward.1} parent=1 // pred_region
      _
    $region5: #{tfn_model_forward.1} parent=1 // pred_fallthru
      _
    // Predicated region
    $region6: #{tfn_model_forward.1} parent=1 // pred_check
      _
    $region7: #{tfn_model_forward.1} parent=1 // pred_check_branch
      %14 = sbr.rel (0) target = $region9
    $region8: #{tfn_model_forward.1} parent=1 // pred_region
      _
    $region9: #{tfn_model_forward.1} parent=1 // pred_fallthru
      _
    // Predicated region
    $region10: #{tfn_model_forward.1} parent=1 // pred_check
      _
    $region11: #{tfn_model_forward.1} parent=1 // pred_check_branch
      %16 = sbr.rel (0) target = $region13
    $region12: #{tfn_model_forward.1} parent=1 // pred_region
      %s18 = ssub.s32 7616, 7616
      %19 = vsyncadd [#allocation4], %s18
      %s20 = sshll.u32 [#allocation3], 4
      %s21 = int_to_ptr.vmem [resolvable:$true] %s20
      %26 = dma.hbm_to_vmem [thread:$0]  %s2, 7616, %s21, [#allocation4], 64, 64, 4
    $region13: #{tfn_model_forward.1} parent=1 // pred_fallthru
      _
    // Predicated region
    $region14: #{tfn_model_forward.1} parent=1 // pred_check
      _
    $region15: #{tfn_model_forward.1} parent=1 // pred_check_branch
      %28 = sbr.rel (0) target = $region17
    $region16: #{tfn_model_forward.1} parent=1 // pred_region
      _
    $region17: #{tfn_model_forward.1} parent=1 // pred_fallthru
      _
    // Predicated region
    $region18: #{tfn_model_forward.1} parent=1 // pred_check
      _
    $region19: #{tfn_model_forward.1} parent=1 // pred_check_branch
      %30 = sbr.rel (0) target = $region21
    $region20: #{tfn_model_forward.1} parent=1 // pred_region
      _
    $region21: #{tfn_model_forward.1} parent=1 // pred_fallthru
      _
    // Predicated region
    $region22: #{tfn_model_forward.1} parent=1 // pred_check
      _
    $region23: #{tfn_model_forward.1} parent=1 // pred_check_branch
      %32 = sbr.rel (0) target = $region25
    $region24: #{tfn_model_forward.1} parent=1 // pred_region
      %33 = dma.done [#allocation4], 7616
    $region25: #{tfn_model_forward.1} parent=1 // pred_fallthru
      _
    %v35 = vld [vmem:[#allocation3 + $0x198] sm:$0xf]
    %v36 = vlaneseq
    %v37 = vshrl.u32 %v36, 7
    %v38 = vadd.s32 %v37, 8
    %v39 = vadd.s32 %v37, 16
    %v40 = vadd.s32 %v37, 24
    %v41 = vadd.s32 %v37, 32
    %v42 = vadd.s32 %v37, 40
    %v43 = vadd.s32 %v37, 48
    %v44 = vadd.s32 %v37, 56
    %vm45 = vcmp.lt.s32.totalorder %v37, 0
    %v46 = vsub.s32 0, %v37
    %v47 = vsel %vm45, %v46, %v37
    %v48 = vshrl.u32 %v47, 5
    %v49 = vand.u32 %v47, 31
    %v50 = vsub.s32 0, %v49
    %v51 = vsel %vm45, %v50, %v49
    %vm52 = vcmp.lt.s32.totalorder %v38, 0
    %v53 = vsub.s32 0, %v38
    %v54 = vsel %vm52, %v53, %v38
    %v55 = vshrl.u32 %v54, 5
    %v56 = vand.u32 %v54, 31
    %v57 = vsub.s32 0, %v56
    %v58 = vsel %vm52, %v57, %v56
    %vm59 = vcmp.lt.s32.totalorder %v39, 0
    %v60 = vsub.s32 0, %v39
    %v61 = vsel %vm59, %v60, %v39
    %v62 = vshrl.u32 %v61, 5
    %v63 = vand.u32 %v61, 31
    %v64 = vsub.s32 0, %v63
    %v65 = vsel %vm59, %v64, %v63
    %vm66 = vcmp.lt.s32.totalorder %v40, 0
    %v67 = vsub.s32 0, %v40
    %v68 = vsel %vm66, %v67, %v40
    %v69 = vshrl.u32 %v68, 5
    %v70 = vand.u32 %v68, 31
    %v71 = vsub.s32 0, %v70
    %v72 = vsel %vm66, %v71, %v70
    %vm73 = vcmp.lt.s32.totalorder %v41, 0
    %v74 = vsub.s32 0, %v41
    %v75 = vsel %vm73, %v74, %v41
    %v76 = vshrl.u32 %v75, 5
    %v77 = vand.u32 %v75, 31
    %v78 = vsub.s32 0, %v77
    %v79 = vsel %vm73, %v78, %v77
    %vm80 = vcmp.lt.s32.totalorder %v42, 0
    %v81 = vsub.s32 0, %v42
    %v82 = vsel %vm80, %v81, %v42
    %v83 = vshrl.u32 %v82, 5
    %v84 = vand.u32 %v82, 31
    %v85 = vsub.s32 0, %v84
    %v86 = vsel %vm80, %v85, %v84
    %vm87 = vcmp.lt.s32.totalorder %v43, 0
    %v88 = vsub.s32 0, %v43
    %v89 = vsel %vm87, %v88, %v43
    %v90 = vshrl.u32 %v89, 5
    %v91 = vand.u32 %v89, 31
    %v92 = vsub.s32 0, %v91
    %v93 = vsel %vm87, %v92, %v91
    %vm94 = vcmp.lt.s32.totalorder %v44, 0
    %v95 = vsub.s32 0, %v44
    %v96 = vsel %vm94, %v95, %v44
    %v97 = vshrl.u32 %v96, 5
    %v98 = vand.u32 %v96, 31
    %v99 = vsub.s32 0, %v98
    %v100 = vsel %vm94, %v99, %v98
    %vm101 = vcmp.ne.s32.totalorder %v51, 0
    %vm102 = vcmp.ne.s32.totalorder %v58, 0
    %vm103 = vcmp.ne.s32.totalorder %v65, 0
    %vm104 = vcmp.ne.s32.totalorder %v72, 0
    %vm105 = vcmp.ne.s32.totalorder %v79, 0
    %vm106 = vcmp.ne.s32.totalorder %v86, 0
    %vm107 = vcmp.ne.s32.totalorder %v93, 0
    %vm108 = vcmp.ne.s32.totalorder %v100, 0
    %vm109 = vcmp.lt.s32.totalorder %v51, 0
    %vm110 = vcmp.lt.s32.totalorder %v58, 0
    %vm111 = vcmp.lt.s32.totalorder %v65, 0
    %vm112 = vcmp.lt.s32.totalorder %v72, 0
    %vm113 = vcmp.lt.s32.totalorder %v79, 0
    %vm114 = vcmp.lt.s32.totalorder %v86, 0
    %vm115 = vcmp.lt.s32.totalorder %v93, 0
    %vm116 = vcmp.lt.s32.totalorder %v100, 0
    %vm117 = vmand %vm109, %vm101
    %vm118 = vmand %vm110, %vm102
    %vm119 = vmand %vm111, %vm103
    %vm120 = vmand %vm112, %vm104
    %vm121 = vmand %vm113, %vm105
    %vm122 = vmand %vm114, %vm106
    %vm123 = vmand %vm115, %vm107
    %vm124 = vmand %vm116, %vm108
    %v125 = vadd.s32 %v51, 32
    %v126 = vadd.s32 %v58, 32
    %v127 = vadd.s32 %v65, 32
    %v128 = vadd.s32 %v72, 32
    %v129 = vadd.s32 %v79, 32
    %v130 = vadd.s32 %v86, 32
    %v131 = vadd.s32 %v93, 32
    %v132 = vadd.s32 %v100, 32
    %v133 = vsel %vm117, %v125, %v51
    %v134 = vsel %vm118, %v126, %v58
    %v135 = vsel %vm119, %v127, %v65
    %v136 = vsel %vm120, %v128, %v72
    %v137 = vsel %vm121, %v129, %v79
    %v138 = vsel %vm122, %v130, %v86
    %v139 = vsel %vm123, %v131, %v93
    %v140 = vsel %vm124, %v132, %v100
    %vm141 = vcmp.ge.s32.totalorder %v133, 8
    %vm142 = vcmp.ge.s32.totalorder %v134, 8
    %vm143 = vcmp.ge.s32.totalorder %v135, 8
    %vm144 = vcmp.ge.s32.totalorder %v136, 8
    %vm145 = vcmp.ge.s32.totalorder %v137, 8
    %vm146 = vcmp.ge.s32.totalorder %v138, 8
    %vm147 = vcmp.ge.s32.totalorder %v139, 8
    %vm148 = vcmp.ge.s32.totalorder %v140, 8
    %vm149 = vcmp.lt.s32.totalorder %v133, 24
    %vm150 = vcmp.lt.s32.totalorder %v134, 24
    %vm151 = vcmp.lt.s32.totalorder %v135, 24
    %vm152 = vcmp.lt.s32.totalorder %v136, 24
    %vm153 = vcmp.lt.s32.totalorder %v137, 24
    %vm154 = vcmp.lt.s32.totalorder %v138, 24
    %vm155 = vcmp.lt.s32.totalorder %v139, 24
    %vm156 = vcmp.lt.s32.totalorder %v140, 24
    %vm157 = vmand %vm141, %vm149
    %vm158 = vmand %vm142, %vm150
    %vm159 = vmand %vm143, %vm151
    %vm160 = vmand %vm144, %vm152
    %vm161 = vmand %vm145, %vm153
    %vm162 = vmand %vm146, %vm154
    %vm163 = vmand %vm147, %vm155
    %vm164 = vmand %vm148, %vm156
    %v165 = vsel %vm157, 1, 0
    %v166 = vsel %vm158, 1, 0
    %v167 = vsel %vm159, 1, 0
    %v168 = vsel %vm160, 1, 0
    %v169 = vsel %vm161, 1, 0
    %v170 = vsel %vm162, 1, 0
    %v171 = vsel %vm163, 1, 0
    %v172 = vsel %vm164, 1, 0
    %v173 = vcvt.s32.f32 %v165
    %v174 = vcvt.s32.f32 %v166
    %v175 = vcvt.s32.f32 %v167
    %v176 = vcvt.s32.f32 %v168
    %v177 = vcvt.s32.f32 %v169
    %v178 = vcvt.s32.f32 %v170
    %v179 = vcvt.s32.f32 %v171
    %v180 = vcvt.s32.f32 %v172
    %vm181 = vcmask 130048
    %182 = vst.msk [vmem:[#allocation2] sm:$0xff] %vm181, 0.0
    %183 = vst.msk [vmem:[#allocation2 + $0x8] sm:$0xff] %vm181, 0.0
    %184 = vst.msk [vmem:[#allocation2 + $0x10] sm:$0xff] %vm181, 0.0
    %185 = vst.msk [vmem:[#allocation2 + $0x18] sm:$0xff] %vm181, 0.0
    %186 = vst.msk [vmem:[#allocation2 + $0x20] sm:$0xff] %vm181, 0.0
    %187 = vst.msk [vmem:[#allocation2 + $0x28] sm:$0xff] %vm181, 0.0
    %188 = vst.msk [vmem:[#allocation2 + $0x30] sm:$0xff] %vm181, 0.0
    %189 = vst.msk [vmem:[#allocation2 + $0x38] sm:$0xff] %vm181, 0.0
    %v190 = vld [vmem:[%s0] sm:$0xff]
    %v191 = vld [vmem:[%s0 + $0x8] sm:$0xff]
    %192 = vst.msk [vmem:[#allocation2 + $0x8] sm:$0xff] %vm181, %v190
    %193 = vst.msk [vmem:[#allocation2 + $0x10] sm:$0xff] %vm181, %v191
    %s194 = scalar_lea.vmem %s0, 16
    %v195 = vld [vmem:[%s194] sm:$0xff]
    %v196 = vld [vmem:[%s194 + $0x8] sm:$0xff]
    %197 = vst.msk [vmem:[#allocation2 + $0x28] sm:$0xff] %vm181, %v195
    %198 = vst.msk [vmem:[#allocation2 + $0x30] sm:$0xff] %vm181, %v196
    %v199 = vld [vmem:[#allocation2] sm:$0xff]
    %v200 = vld [vmem:[#allocation2 + $0x8] sm:$0xff]
    %v201 = vld [vmem:[#allocation2 + $0x10] sm:$0xff]
    %v202 = vld [vmem:[#allocation2 + $0x18] sm:$0xff]
    %v203 = vld [vmem:[#allocation2 + $0x20] sm:$0xff]
    %v204 = vld [vmem:[#allocation2 + $0x28] sm:$0xff]
    %v205 = vld [vmem:[#allocation2 + $0x30] sm:$0xff]
    %v206 = vld [vmem:[#allocation2 + $0x38] sm:$0xff]
    %v207 = vpack.c.bf16 %v200, %v199
    %v208 = vpack.c.bf16 %v202, %v201
    %v209 = vpack.c.bf16 %v204, %v203
    %v210 = vpack.c.bf16 %v206, %v205
    %v211 = vld [vmem:[#allocation3] sm:$0xf]
    %v212 = vld [vmem:[#allocation3 + $0x4] sm:$0xf]
    %v215 = vunpack.c.l.b16 %v211
    %v216 = vunpack.c.l.b16 %v212
    %v217 = vpack.c.b16 %v216, %v215
    %v220 = vsel %vm181, %v207, 0
    %v223 = vsel %vm181, %v208, 0
    %v226 = vsel %vm181, %v209, 0
    %v229 = vsel %vm181, %v210, 0
    %231 = vmatprep.subr.bf16.mxu0 0
    %232 = vmatpush1.bf16.msra.mxu0 0
    %233 = vmatprep.subr.bf16.mxu0 0
    %234 = vmatpush1.bf16.msra.mxu0 0
    %235 = vmatprep.subr.bf16.mxu0 0
    %236 = vmatpush1.bf16.msra.mxu0 0
    %237 = vmatprep.subr.bf16.mxu0 0
    %238 = vmatpush1.bf16.msra.mxu0 0
    %239 = vmatprep.subr.bf16.mxu0 0
    %240 = vmatpush1.bf16.msra.mxu0 0
    %241 = vmatprep.subr.bf16.mxu0 0
    %242 = vmatpush1.bf16.msra.mxu0 0
    %243 = vmatprep.subr.bf16.mxu0 0
    %244 = vmatpush1.bf16.msra.mxu0 0
    %245 = vmatprep.subr.bf16.mxu0 0
    %246 = vmatpush1.bf16.msra.mxu0 %v217
    %247 = vmatprep.subr.bf16.mxu0 0
    %248 = vmatpush2.bf16.msra.mxu0 0
    %249 = vmatprep.subr.bf16.mxu0 0
    %250 = vmatpush2.bf16.msra.mxu0 0
    %251 = vmatprep.subr.bf16.mxu0 0
    %252 = vmatpush2.bf16.msra.mxu0 0
    %253 = vmatprep.subr.bf16.mxu0 0
    %254 = vmatpush2.bf16.msra.mxu0 0
    %255 = vmatprep.subr.bf16.mxu0 0
    %256 = vmatpush2.bf16.msra.mxu0 0
    %257 = vmatprep.subr.bf16.mxu0 0
    %258 = vmatpush2.bf16.msra.mxu0 0
    %259 = vmatprep.subr.bf16.mxu0 0
    %260 = vmatpush2.bf16.msra.mxu0 0
    %261 = vmatprep.subr.bf16.mxu0 0
    %262 = vmatpush2.bf16.msra.mxu0 0
    %263 = vmatprep.mubr.bf16.mxu0 0
    %264 = vmatmul.mubr.bf16.gmra.mxu0 %v220
    %v265 = vpop.f32.mrf.mxu0
    %v266 = vadd.f32 0.0, %v265
    %v267 = vpop.f32.mrf.mxu0
    %v268 = vpop.f32.mrf.mxu0
    %v269 = vadd.f32 0.0, %v268
    %v270 = vpop.f32.mrf.mxu0
    %271 = vmatprep.mubr.bf16.mxu0 0
    %272 = vmatmul.mubr.bf16.gmra.mxu0 %v223
    %v273 = vpop.f32.mrf.mxu0
    %v274 = vadd.f32 0.0, %v273
    %v275 = vpop.f32.mrf.mxu0
    %v276 = vpop.f32.mrf.mxu0
    %v277 = vadd.f32 0.0, %v276
    %v278 = vpop.f32.mrf.mxu0
    %279 = vmatprep.mubr.bf16.mxu0 0
    %280 = vmatmul.mubr.bf16.gmra.mxu0 %v226
    %v281 = vpop.f32.mrf.mxu0
    %v282 = vadd.f32 0.0, %v281
    %v283 = vpop.f32.mrf.mxu0
    %v284 = vpop.f32.mrf.mxu0
    %v285 = vadd.f32 0.0, %v284
    %v286 = vpop.f32.mrf.mxu0
    %287 = vmatprep.mubr.bf16.mxu0 0
    %288 = vmatmul.mubr.bf16.gmra.mxu0 %v229
    %v289 = vpop.f32.mrf.mxu0
    %v290 = vadd.f32 0.0, %v289
    %v291 = vpop.f32.mrf.mxu0
    %v292 = vpop.f32.mrf.mxu0
    %v293 = vadd.f32 0.0, %v292
    %v294 = vpop.f32.mrf.mxu0
    %295 = vdwg.mxu0
    %v296 = vld [vmem:[#allocation3 + $0x8] sm:$0xf]
    %v297 = vld [vmem:[#allocation3 + $0xc] sm:$0xf]
    %v300 = vunpack.c.l.b16 %v296
    %v301 = vunpack.c.l.b16 %v297
    %v302 = vpack.c.b16 %v301, %v300
    %304 = vmatprep.subr.bf16.mxu0 0
    %305 = vmatpush1.bf16.msra.mxu0 0
    %306 = vmatprep.subr.bf16.mxu0 0
    %307 = vmatpush1.bf16.msra.mxu0 0
    %308 = vmatprep.subr.bf16.mxu0 0
    %309 = vmatpush1.bf16.msra.mxu0 0
    %310 = vmatprep.subr.bf16.mxu0 0
    %311 = vmatpush1.bf16.msra.mxu0 0
    %312 = vmatprep.subr.bf16.mxu0 0
    %313 = vmatpush1.bf16.msra.mxu0 0
    %314 = vmatprep.subr.bf16.mxu0 0
    %315 = vmatpush1.bf16.msra.mxu0 0
    %316 = vmatprep.subr.bf16.mxu0 0
    %317 = vmatpush1.bf16.msra.mxu0 0
    %318 = vmatprep.subr.bf16.mxu0 0
    %319 = vmatpush1.bf16.msra.mxu0 %v302
    %320 = vmatprep.subr.bf16.mxu0 0
    %321 = vmatpush2.bf16.msra.mxu0 0
    %322 = vmatprep.subr.bf16.mxu0 0
    %323 = vmatpush2.bf16.msra.mxu0 0
    %324 = vmatprep.subr.bf16.mxu0 0
    %325 = vmatpush2.bf16.msra.mxu0 0
    %326 = vmatprep.subr.bf16.mxu0 0
    %327 = vmatpush2.bf16.msra.mxu0 0
    %328 = vmatprep.subr.bf16.mxu0 0
    %329 = vmatpush2.bf16.msra.mxu0 0
    %330 = vmatprep.subr.bf16.mxu0 0
    %331 = vmatpush2.bf16.msra.mxu0 0
    %332 = vmatprep.subr.bf16.mxu0 0
    %333 = vmatpush2.bf16.msra.mxu0 0
    %334 = vmatprep.subr.bf16.mxu0 0
    %335 = vmatpush2.bf16.msra.mxu0 0
    %336 = vmatprep.mubr.bf16.mxu0 0
    %337 = vmatmul.mubr.bf16.gmra.mxu0 %v220
    %v338 = vpop.f32.mrf.mxu0
    %v339 = vadd.f32 0.0, %v338
    %v340 = vpop.f32.mrf.mxu0
    %v341 = vpop.f32.mrf.mxu0
    %v342 = vadd.f32 0.0, %v341
    %v343 = vpop.f32.mrf.mxu0
    %344 = vmatprep.mubr.bf16.mxu0 0
    %345 = vmatmul.mubr.bf16.gmra.mxu0 %v223
    %v346 = vpop.f32.mrf.mxu0
    %v347 = vadd.f32 0.0, %v346
    %v348 = vpop.f32.mrf.mxu0
    %v349 = vpop.f32.mrf.mxu0
    %v350 = vadd.f32 0.0, %v349
    %v351 = vpop.f32.mrf.mxu0
    %352 = vmatprep.mubr.bf16.mxu0 0
    %353 = vmatmul.mubr.bf16.gmra.mxu0 %v226
    %v354 = vpop.f32.mrf.mxu0
    %v355 = vadd.f32 0.0, %v354
    %v356 = vpop.f32.mrf.mxu0
    %v357 = vpop.f32.mrf.mxu0
    %v358 = vadd.f32 0.0, %v357
    %v359 = vpop.f32.mrf.mxu0
    %360 = vmatprep.mubr.bf16.mxu0 0
    %361 = vmatmul.mubr.bf16.gmra.mxu0 %v229
    %v362 = vpop.f32.mrf.mxu0
    %v363 = vadd.f32 0.0, %v362
    %v364 = vpop.f32.mrf.mxu0
    %v365 = vpop.f32.mrf.mxu0
    %v366 = vadd.f32 0.0, %v365
    %v367 = vpop.f32.mrf.mxu0
    %368 = vdwg.mxu0
    %v369 = vld [vmem:[#allocation3 + $0x10] sm:$0xf]
    %v370 = vld [vmem:[#allocation3 + $0x14] sm:$0xf]
    %v373 = vunpack.c.l.b16 %v369
    %v374 = vunpack.c.l.b16 %v370
    %v375 = vpack.c.b16 %v374, %v373
    %377 = vmatprep.subr.bf16.mxu0 0
    %378 = vmatpush1.bf16.msra.mxu0 0
    %379 = vmatprep.subr.bf16.mxu0 0
    %380 = vmatpush1.bf16.msra.mxu0 0
    %381 = vmatprep.subr.bf16.mxu0 0
    %382 = vmatpush1.bf16.msra.mxu0 0
    %383 = vmatprep.subr.bf16.mxu0 0
    %384 = vmatpush1.bf16.msra.mxu0 0
    %385 = vmatprep.subr.bf16.mxu0 0
    %386 = vmatpush1.bf16.msra.mxu0 0
    %387 = vmatprep.subr.bf16.mxu0 0
    %388 = vmatpush1.bf16.msra.mxu0 0
    %389 = vmatprep.subr.bf16.mxu0 0
    %390 = vmatpush1.bf16.msra.mxu0 0
    %391 = vmatprep.subr.bf16.mxu0 0
    %392 = vmatpush1.bf16.msra.mxu0 %v375
    %393 = vmatprep.subr.bf16.mxu0 0
    %394 = vmatpush2.bf16.msra.mxu0 0
    %395 = vmatprep.subr.bf16.mxu0 0
    %396 = vmatpush2.bf16.msra.mxu0 0
    %397 = vmatprep.subr.bf16.mxu0 0
    %398 = vmatpush2.bf16.msra.mxu0 0
    %399 = vmatprep.subr.bf16.mxu0 0
    %400 = vmatpush2.bf16.msra.mxu0 0
    %401 = vmatprep.subr.bf16.mxu0 0
    %402 = vmatpush2.bf16.msra.mxu0 0
    %403 = vmatprep.subr.bf16.mxu0 0
    %404 = vmatpush2.bf16.msra.mxu0 0
    %405 = vmatprep.subr.bf16.mxu0 0
    %406 = vmatpush2.bf16.msra.mxu0 0
    %407 = vmatprep.subr.bf16.mxu0 0
    %408 = vmatpush2.bf16.msra.mxu0 0
    %409 = vmatprep.mubr.bf16.mxu0 0
    %410 = vmatmul.mubr.bf16.gmra.mxu0 %v220
    %v411 = vpop.f32.mrf.mxu0
    %v412 = vadd.f32 0.0, %v411
    %v413 = vpop.f32.mrf.mxu0
    %v414 = vpop.f32.mrf.mxu0
    %v415 = vadd.f32 0.0, %v414
    %v416 = vpop.f32.mrf.mxu0
    %417 = vmatprep.mubr.bf16.mxu0 0
    %418 = vmatmul.mubr.bf16.gmra.mxu0 %v223
    %v419 = vpop.f32.mrf.mxu0
    %v420 = vadd.f32 0.0, %v419
    %v421 = vpop.f32.mrf.mxu0
    %v422 = vpop.f32.mrf.mxu0
    %v423 = vadd.f32 0.0, %v422
    %v424 = vpop.f32.mrf.mxu0
    %425 = vmatprep.mubr.bf16.mxu0 0
    %426 = vmatmul.mubr.bf16.gmra.mxu0 %v226
    %v427 = vpop.f32.mrf.mxu0
    %v428 = vadd.f32 0.0, %v427
    %v429 = vpop.f32.mrf.mxu0
    %v430 = vpop.f32.mrf.mxu0
    %v431 = vadd.f32 0.0, %v430
    %v432 = vpop.f32.mrf.mxu0
    %433 = vmatprep.mubr.bf16.mxu0 0
    %434 = vmatmul.mubr.bf16.gmra.mxu0 %v229
    %v435 = vpop.f32.mrf.mxu0
    %v436 = vadd.f32 0.0, %v435
    %v437 = vpop.f32.mrf.mxu0
    %v438 = vpop.f32.mrf.mxu0
    %v439 = vadd.f32 0.0, %v438
    %v440 = vpop.f32.mrf.mxu0
    %441 = vdwg.mxu0
    %v442 = vrot.slane %v266, 7
    %v443 = vrot.slane %v269, 7
    %v444 = vrot.slane %v274, 7
    %v445 = vrot.slane %v277, 7
    %v446 = vrot.slane %v282, 7
    %v447 = vrot.slane %v285, 7
    %v448 = vrot.slane %v290, 7
    %v449 = vrot.slane %v293, 7
    %vm450 = vcmp.lt.s32.totalorder %v37, 1
    %v451 = vsel %vm450, %v448, %v449
    %v452 = vsel %vm450, %v447, %v448
    %v453 = vsel %vm450, %v446, %v447
    %v454 = vsel %vm450, %v445, %v446
    %v455 = vsel %vm450, %v444, %v445
    %v456 = vsel %vm450, %v443, %v444
    %v457 = vsel %vm450, %v442, %v443
    %v458 = vsel %vm450, %v449, %v442
    %v459 = vadd.f32 %v458, %v339
    %v460 = vadd.f32 %v457, %v342
    %v461 = vadd.f32 %v456, %v347
    %v462 = vadd.f32 %v455, %v350
    %v463 = vadd.f32 %v454, %v355
    %v464 = vadd.f32 %v453, %v358
    %v465 = vadd.f32 %v452, %v363
    %v466 = vadd.f32 %v451, %v366
    %v467 = vrot.slane %v412, 1
    %v468 = vrot.slane %v415, 1
    %v469 = vrot.slane %v420, 1
    %v470 = vrot.slane %v423, 1
    %v471 = vrot.slane %v428, 1
    %v472 = vrot.slane %v431, 1
    %v473 = vrot.slane %v436, 1
    %v474 = vrot.slane %v439, 1
    %vm475 = vcmp.lt.s32.totalorder %v37, 7
    %v476 = vsel %vm475, %v473, %v474
    %v477 = vsel %vm475, %v472, %v473
    %v478 = vsel %vm475, %v471, %v472
    %v479 = vsel %vm475, %v470, %v471
    %v480 = vsel %vm475, %v469, %v470
    %v481 = vsel %vm475, %v468, %v469
    %v482 = vsel %vm475, %v467, %v468
    %v483 = vsel %vm475, %v474, %v467
    %v484 = vadd.f32 %v459, %v482
    %v485 = vadd.f32 %v460, %v481
    %v486 = vadd.f32 %v461, %v480
    %v487 = vadd.f32 %v462, %v479
    %v488 = vadd.f32 %v463, %v478
    %v489 = vadd.f32 %v464, %v477
    %v490 = vadd.f32 %v465, %v476
    %v491 = vadd.f32 %v466, %v483
    %v492 = vunpack.c.l.bf16 %v35
    %v493 = vlaneseq
    %v494 = vshrl.u32 %v493, 7
    %v495 = vsub.s32 0, %v494
    %v496 = vrot.slane %v492, %v495
    %v497 = vadd.f32 %v484, %v496
    %v498 = vadd.f32 %v485, %v496
    %v499 = vadd.f32 %v486, %v496
    %v500 = vadd.f32 %v487, %v496
    %v501 = vadd.f32 %v488, %v496
    %v502 = vadd.f32 %v489, %v496
    %v503 = vadd.f32 %v490, %v496
    %v504 = vadd.f32 %v491, %v496
    %v505 = vmax.f32 %v497, 0.0
    %v506 = vmax.f32 %v498, 0.0
    %v507 = vmax.f32 %v499, 0.0
    %v508 = vmax.f32 %v500, 0.0
    %v509 = vmax.f32 %v501, 0.0
    %v510 = vmax.f32 %v502, 0.0
    %v511 = vmax.f32 %v503, 0.0
    %v512 = vmax.f32 %v504, 0.0
    %v513 = vmul.f32 %v505, %v173
    %v514 = vmul.f32 %v506, %v174
    %v515 = vmul.f32 %v507, %v175
    %v516 = vmul.f32 %v508, %v176
    %v517 = vmul.f32 %v509, %v177
    %v518 = vmul.f32 %v510, %v178
    %v519 = vmul.f32 %v511, %v179
    %v520 = vmul.f32 %v512, %v180
    %v521 = vrot.slane %v513, 7
    %v522 = vrot.slane %v514, 7
    %v523 = vrot.slane %v515, 7
    %v524 = vrot.slane %v516, 7
    %v525 = vrot.slane %v517, 7
    %v526 = vrot.slane %v518, 7
    %v527 = vrot.slane %v519, 7
    %v528 = vrot.slane %v520, 7
    %v529 = vsel %vm450, %v527, %v528
    %v530 = vsel %vm450, %v526, %v527
    %v531 = vsel %vm450, %v525, %v526
    %v532 = vsel %vm450, %v524, %v525
    %v533 = vsel %vm450, %v523, %v524
    %v534 = vsel %vm450, %v522, %v523
    %v535 = vsel %vm450, %v521, %v522
    %v536 = vsel %vm450, %v528, %v521
    %v537 = vpack.c.bf16 %v535, %v536
    %v538 = vpack.c.bf16 %v533, %v534
    %v539 = vpack.c.bf16 %v531, %v532
    %v540 = vpack.c.bf16 %v529, %v530
    %v541 = vpack.c.bf16 %v514, %v513
    %v542 = vpack.c.bf16 %v516, %v515
    %v543 = vpack.c.bf16 %v518, %v517
    %v544 = vpack.c.bf16 %v520, %v519
    %v545 = vrot.slane %v513, 1
    %v546 = vrot.slane %v514, 1
    %v547 = vrot.slane %v515, 1
    %v548 = vrot.slane %v516, 1
    %v549 = vrot.slane %v517, 1
    %v550 = vrot.slane %v518, 1
    %v551 = vrot.slane %v519, 1
    %v552 = vrot.slane %v520, 1
    %v553 = vsel %vm475, %v551, %v552
    %v554 = vsel %vm475, %v550, %v551
    %v555 = vsel %vm475, %v549, %v550
    %v556 = vsel %vm475, %v548, %v549
    %v557 = vsel %vm475, %v547, %v548
    %v558 = vsel %vm475, %v546, %v547
    %v559 = vsel %vm475, %v545, %v546
    %v560 = vsel %vm475, %v552, %v545
    %v561 = vpack.c.bf16 %v558, %v559
    %v562 = vpack.c.bf16 %v556, %v557
    %v563 = vpack.c.bf16 %v554, %v555
    %v564 = vpack.c.bf16 %v560, %v553
    %v565 = vld [vmem:[#allocation3 + $0x18] sm:$0xf]
    %v566 = vld [vmem:[#allocation3 + $0x1c] sm:$0xf]
    %v567 = vld [vmem:[#allocation3 + $0x20] sm:$0xf]
    %v568 = vld [vmem:[#allocation3 + $0x24] sm:$0xf]
    %v569 = vld [vmem:[#allocation3 + $0x28] sm:$0xf]
    %v570 = vld [vmem:[#allocation3 + $0x2c] sm:$0xf]
    %v571 = vld [vmem:[#allocation3 + $0x30] sm:$0xf]
    %v572 = vld [vmem:[#allocation3 + $0x34] sm:$0xf]
    %v573 = vld [vmem:[#allocation3 + $0x38] sm:$0xf]
    %v574 = vld [vmem:[#allocation3 + $0x3c] sm:$0xf]
    %v575 = vld [vmem:[#allocation3 + $0x40] sm:$0xf]
    %v576 = vld [vmem:[#allocation3 + $0x44] sm:$0xf]
    %v577 = vld [vmem:[#allocation3 + $0x48] sm:$0xf]
    %v578 = vld [vmem:[#allocation3 + $0x4c] sm:$0xf]
    %v579 = vld [vmem:[#allocation3 + $0x50] sm:$0xf]
    %v580 = vld [vmem:[#allocation3 + $0x54] sm:$0xf]
    %v581 = vld [vmem:[#allocation3 + $0x58] sm:$0xf]
    %v582 = vld [vmem:[#allocation3 + $0x5c] sm:$0xf]
    %v583 = vld [vmem:[#allocation3 + $0x60] sm:$0xf]
    %v584 = vld [vmem:[#allocation3 + $0x64] sm:$0xf]
    %v585 = vld [vmem:[#allocation3 + $0x68] sm:$0xf]
    %v586 = vld [vmem:[#allocation3 + $0x6c] sm:$0xf]
    %v587 = vld [vmem:[#allocation3 + $0x70] sm:$0xf]
    %v588 = vld [vmem:[#allocation3 + $0x74] sm:$0xf]
    %v589 = vld [vmem:[#allocation3 + $0x78] sm:$0xf]
    %v590 = vld [vmem:[#allocation3 + $0x7c] sm:$0xf]
    %v591 = vld [vmem:[#allocation3 + $0x80] sm:$0xf]
    %v592 = vld [vmem:[#allocation3 + $0x84] sm:$0xf]
    %v593 = vld [vmem:[#allocation3 + $0x88] sm:$0xf]
    %v594 = vld [vmem:[#allocation3 + $0x8c] sm:$0xf]
    %v595 = vld [vmem:[#allocation3 + $0x90] sm:$0xf]
    %v596 = vld [vmem:[#allocation3 + $0x94] sm:$0xf]
    %v597 = vld [vmem:[#allocation3 + $0x98] sm:$0xf]
    %v598 = vld [vmem:[#allocation3 + $0x9c] sm:$0xf]
    %v599 = vld [vmem:[#allocation3 + $0xa0] sm:$0xf]
    %v600 = vld [vmem:[#allocation3 + $0xa4] sm:$0xf]
    %v601 = vld [vmem:[#allocation3 + $0xa8] sm:$0xf]
    %v602 = vld [vmem:[#allocation3 + $0xac] sm:$0xf]
    %v603 = vld [vmem:[#allocation3 + $0xb0] sm:$0xf]
    %v604 = vld [vmem:[#allocation3 + $0xb4] sm:$0xf]
    %v605 = vld [vmem:[#allocation3 + $0xb8] sm:$0xf]
    %v606 = vld [vmem:[#allocation3 + $0xbc] sm:$0xf]
    %v607 = vld [vmem:[#allocation3 + $0xc0] sm:$0xf]
    %v608 = vld [vmem:[#allocation3 + $0xc4] sm:$0xf]
    %v609 = vld [vmem:[#allocation3 + $0xc8] sm:$0xf]
    %v610 = vld [vmem:[#allocation3 + $0xcc] sm:$0xf]
    %v611 = vld [vmem:[#allocation3 + $0xd0] sm:$0xf]
    %v612 = vld [vmem:[#allocation3 + $0xd4] sm:$0xf]
    %v613 = vlaneseq
    %v614 = vshrl.u32 %v613, 7
    %v615 = vsub.s32 1, %v614
    %v616 = vrot.slane %v492, %v615
    %v665 = vunpack.c.l.b16 %v565
    %v666 = vunpack.c.l.b16 %v566
    %v667 = vunpack.c.l.b16 %v567
    %v668 = vunpack.c.l.b16 %v568
    %v669 = vunpack.c.l.b16 %v569
    %v670 = vunpack.c.l.b16 %v570
    %v671 = vunpack.c.l.b16 %v571
    %v672 = vunpack.c.l.b16 %v572
    %v673 = vunpack.c.l.b16 %v573
    %v674 = vunpack.c.l.b16 %v574
    %v675 = vunpack.c.l.b16 %v575
    %v676 = vunpack.c.l.b16 %v576
    %v677 = vunpack.c.l.b16 %v577
    %v678 = vunpack.c.l.b16 %v578
    %v679 = vunpack.c.l.b16 %v579
    %v680 = vunpack.c.l.b16 %v580
    %v681 = vunpack.c.l.b16 %v581
    %v682 = vunpack.c.l.b16 %v582
    %v683 = vunpack.c.l.b16 %v583
    %v684 = vunpack.c.l.b16 %v584
    %v685 = vunpack.c.l.b16 %v585
    %v686 = vunpack.c.l.b16 %v586
    %v687 = vunpack.c.l.b16 %v587
    %v688 = vunpack.c.l.b16 %v588
    %v689 = vunpack.c.l.b16 %v589
    %v690 = vunpack.c.l.b16 %v590
    %v691 = vunpack.c.l.b16 %v591
    %v692 = vunpack.c.l.b16 %v592
    %v693 = vunpack.c.l.b16 %v593
    %v694 = vunpack.c.l.b16 %v594
    %v695 = vunpack.c.l.b16 %v595
    %v696 = vunpack.c.l.b16 %v596
    %v697 = vunpack.c.l.b16 %v597
    %v698 = vunpack.c.l.b16 %v598
    %v699 = vunpack.c.l.b16 %v599
    %v700 = vunpack.c.l.b16 %v600
    %v701 = vunpack.c.l.b16 %v601
    %v702 = vunpack.c.l.b16 %v602
    %v703 = vunpack.c.l.b16 %v603
    %v704 = vunpack.c.l.b16 %v604
    %v705 = vunpack.c.l.b16 %v605
    %v706 = vunpack.c.l.b16 %v606
    %v707 = vunpack.c.l.b16 %v607
    %v708 = vunpack.c.l.b16 %v608
    %v709 = vunpack.c.l.b16 %v609
    %v710 = vunpack.c.l.b16 %v610
    %v711 = vunpack.c.l.b16 %v611
    %v712 = vunpack.c.l.b16 %v612
    %v713 = vpack.c.b16 %v666, %v665
    %v714 = vpack.c.b16 %v668, %v667
    %v715 = vpack.c.b16 %v670, %v669
    %v716 = vpack.c.b16 %v672, %v671
    %v717 = vpack.c.b16 %v674, %v673
    %v718 = vpack.c.b16 %v676, %v675
    %v719 = vpack.c.b16 %v678, %v677
    %v720 = vpack.c.b16 %v680, %v679
    %v721 = vpack.c.b16 %v682, %v681
    %v722 = vpack.c.b16 %v684, %v683
    %v723 = vpack.c.b16 %v686, %v685
    %v724 = vpack.c.b16 %v688, %v687
    %v725 = vpack.c.b16 %v690, %v689
    %v726 = vpack.c.b16 %v692, %v691
    %v727 = vpack.c.b16 %v694, %v693
    %v728 = vpack.c.b16 %v696, %v695
    %v729 = vpack.c.b16 %v698, %v697
    %v730 = vpack.c.b16 %v700, %v699
    %v731 = vpack.c.b16 %v702, %v701
    %v732 = vpack.c.b16 %v704, %v703
    %v733 = vpack.c.b16 %v706, %v705
    %v734 = vpack.c.b16 %v708, %v707
    %v735 = vpack.c.b16 %v710, %v709
    %v736 = vpack.c.b16 %v712, %v711
    %761 = vmatprep.subr.bf16.mxu0 0
    %762 = vmatpush1.bf16.msra.mxu0 %v720
    %763 = vmatprep.subr.bf16.mxu0 0
    %764 = vmatpush1.bf16.msra.mxu0 %v719
    %765 = vmatprep.subr.bf16.mxu0 0
    %766 = vmatpush1.bf16.msra.mxu0 %v718
    %767 = vmatprep.subr.bf16.mxu0 0
    %768 = vmatpush1.bf16.msra.mxu0 %v717
    %769 = vmatprep.subr.bf16.mxu0 0
    %770 = vmatpush1.bf16.msra.mxu0 %v716
    %771 = vmatprep.subr.bf16.mxu0 0
    %772 = vmatpush1.bf16.msra.mxu0 %v715
    %773 = vmatprep.subr.bf16.mxu0 0
    %774 = vmatpush1.bf16.msra.mxu0 %v714
    %775 = vmatprep.subr.bf16.mxu0 0
    %776 = vmatpush1.bf16.msra.mxu0 %v713
    %777 = vmatprep.subr.bf16.mxu0 0
    %778 = vmatpush2.bf16.msra.mxu0 %v728
    %779 = vmatprep.subr.bf16.mxu0 0
    %780 = vmatpush2.bf16.msra.mxu0 %v727
    %781 = vmatprep.subr.bf16.mxu0 0
    %782 = vmatpush2.bf16.msra.mxu0 %v726
    %783 = vmatprep.subr.bf16.mxu0 0
    %784 = vmatpush2.bf16.msra.mxu0 %v725
    %785 = vmatprep.subr.bf16.mxu0 0
    %786 = vmatpush2.bf16.msra.mxu0 %v724
    %787 = vmatprep.subr.bf16.mxu0 0
    %788 = vmatpush2.bf16.msra.mxu0 %v723
    %789 = vmatprep.subr.bf16.mxu0 0
    %790 = vmatpush2.bf16.msra.mxu0 %v722
    %791 = vmatprep.subr.bf16.mxu0 0
    %792 = vmatpush2.bf16.msra.mxu0 %v721
    %793 = vmatprep.mubr.bf16.mxu0 %v541
    %794 = vmatmul.mubr.bf16.gmra.mxu0 %v537
    %v795 = vpop.f32.mrf.mxu0
    %v796 = vadd.f32 %v616, %v795
    %v797 = vpop.f32.mrf.mxu0
    %v798 = vpop.f32.mrf.mxu0
    %v799 = vadd.f32 %v616, %v798
    %v800 = vpop.f32.mrf.mxu0
    %801 = vmatprep.mubr.bf16.mxu0 %v542
    %802 = vmatmul.mubr.bf16.gmra.mxu0 %v538
    %v803 = vpop.f32.mrf.mxu0
    %v804 = vadd.f32 %v616, %v803
    %v805 = vpop.f32.mrf.mxu0
    %v806 = vpop.f32.mrf.mxu0
    %v807 = vadd.f32 %v616, %v806
    %v808 = vpop.f32.mrf.mxu0
    %809 = vmatprep.mubr.bf16.mxu0 %v543
    %810 = vmatmul.mubr.bf16.gmra.mxu0 %v539
    %v811 = vpop.f32.mrf.mxu0
    %v812 = vadd.f32 %v616, %v811
    %v813 = vpop.f32.mrf.mxu0
    %v814 = vpop.f32.mrf.mxu0
    %v815 = vadd.f32 %v616, %v814
    %v816 = vpop.f32.mrf.mxu0
    %817 = vmatprep.mubr.bf16.mxu0 %v544
    %818 = vmatmul.mubr.bf16.gmra.mxu0 %v540
    %v819 = vpop.f32.mrf.mxu0
    %v820 = vadd.f32 %v616, %v819
    %v821 = vpop.f32.mrf.mxu0
    %v822 = vpop.f32.mrf.mxu0
    %v823 = vadd.f32 %v616, %v822
    %v824 = vpop.f32.mrf.mxu0
    %825 = vdwg.mxu0
    %826 = vmatprep.subr.bf16.mxu0 0
    %827 = vmatpush1.bf16.msra.mxu0 %v736
    %828 = vmatprep.subr.bf16.mxu0 0
    %829 = vmatpush1.bf16.msra.mxu0 %v735
    %830 = vmatprep.subr.bf16.mxu0 0
    %831 = vmatpush1.bf16.msra.mxu0 %v734
    %832 = vmatprep.subr.bf16.mxu0 0
    %833 = vmatpush1.bf16.msra.mxu0 %v733
    %834 = vmatprep.subr.bf16.mxu0 0
    %835 = vmatpush1.bf16.msra.mxu0 %v732
    %836 = vmatprep.subr.bf16.mxu0 0
    %837 = vmatpush1.bf16.msra.mxu0 %v731
    %838 = vmatprep.subr.bf16.mxu0 0
    %839 = vmatpush1.bf16.msra.mxu0 %v730
    %840 = vmatprep.subr.bf16.mxu0 0
    %841 = vmatpush1.bf16.msra.mxu0 %v729
    %842 = vmatprep.subr.bf16.mxu0 0
    %843 = vmatpush2.bf16.msra.mxu0 0
    %844 = vmatprep.subr.bf16.mxu0 0
    %845 = vmatpush2.bf16.msra.mxu0 0
    %846 = vmatprep.subr.bf16.mxu0 0
    %847 = vmatpush2.bf16.msra.mxu0 0
    %848 = vmatprep.subr.bf16.mxu0 0
    %849 = vmatpush2.bf16.msra.mxu0 0
    %850 = vmatprep.subr.bf16.mxu0 0
    %851 = vmatpush2.bf16.msra.mxu0 0
    %852 = vmatprep.subr.bf16.mxu0 0
    %853 = vmatpush2.bf16.msra.mxu0 0
    %854 = vmatprep.subr.bf16.mxu0 0
    %855 = vmatpush2.bf16.msra.mxu0 0
    %856 = vmatprep.subr.bf16.mxu0 0
    %857 = vmatpush2.bf16.msra.mxu0 0
    %858 = vmatprep.mubr.bf16.mxu0 0
    %859 = vmatmul.mubr.bf16.gmra.mxu0 %v561
    %v860 = vpop.f32.mrf.mxu0
    %v861 = vadd.f32 %v796, %v860
    %v862 = vpop.f32.mrf.mxu0
    %v863 = vpop.f32.mrf.mxu0
    %v864 = vadd.f32 %v799, %v863
    %v865 = vpop.f32.mrf.mxu0
    %866 = vmatprep.mubr.bf16.mxu0 0
    %867 = vmatmul.mubr.bf16.gmra.mxu0 %v562
    %v868 = vpop.f32.mrf.mxu0
    %v869 = vadd.f32 %v804, %v868
    %v870 = vpop.f32.mrf.mxu0
    %v871 = vpop.f32.mrf.mxu0
    %v872 = vadd.f32 %v807, %v871
    %v873 = vpop.f32.mrf.mxu0
    %874 = vmatprep.mubr.bf16.mxu0 0
    %875 = vmatmul.mubr.bf16.gmra.mxu0 %v563
    %v876 = vpop.f32.mrf.mxu0
    %v877 = vadd.f32 %v812, %v876
    %v878 = vpop.f32.mrf.mxu0
    %v879 = vpop.f32.mrf.mxu0
    %v880 = vadd.f32 %v815, %v879
    %v881 = vpop.f32.mrf.mxu0
    %882 = vmatprep.mubr.bf16.mxu0 0
    %883 = vmatmul.mubr.bf16.gmra.mxu0 %v564
    %v884 = vpop.f32.mrf.mxu0
    %v885 = vadd.f32 %v820, %v884
    %v886 = vpop.f32.mrf.mxu0
    %v887 = vpop.f32.mrf.mxu0
    %v888 = vadd.f32 %v823, %v887
    %v889 = vpop.f32.mrf.mxu0
    %890 = vdwg.mxu0
    %v891 = vmax.f32 %v861, 0.0
    %v892 = vmax.f32 %v864, 0.0
    %v893 = vmax.f32 %v869, 0.0
    %v894 = vmax.f32 %v872, 0.0
    %v895 = vmax.f32 %v877, 0.0
    %v896 = vmax.f32 %v880, 0.0
    %v897 = vmax.f32 %v885, 0.0
    %v898 = vmax.f32 %v888, 0.0
    %v899 = vmul.f32 %v891, %v173
    %v900 = vmul.f32 %v892, %v174
    %v901 = vmul.f32 %v893, %v175
    %v902 = vmul.f32 %v894, %v176
    %v903 = vmul.f32 %v895, %v177
    %v904 = vmul.f32 %v896, %v178
    %v905 = vmul.f32 %v897, %v179
    %v906 = vmul.f32 %v898, %v180
    %v907 = vrot.slane %v899, 7
    %v908 = vrot.slane %v900, 7
    %v909 = vrot.slane %v901, 7
    %v910 = vrot.slane %v902, 7
    %v911 = vrot.slane %v903, 7
    %v912 = vrot.slane %v904, 7
    %v913 = vrot.slane %v905, 7
    %v914 = vrot.slane %v906, 7
    %v915 = vsel %vm450, %v913, %v914
    %v916 = vsel %vm450, %v912, %v913
    %v917 = vsel %vm450, %v911, %v912
    %v918 = vsel %vm450, %v910, %v911
    %v919 = vsel %vm450, %v909, %v910
    %v920 = vsel %vm450, %v908, %v909
    %v921 = vsel %vm450, %v907, %v908
    %v922 = vsel %vm450, %v914, %v907
    %v923 = vpack.c.bf16 %v921, %v922
    %v924 = vpack.c.bf16 %v919, %v920
    %v925 = vpack.c.bf16 %v917, %v918
    %v926 = vpack.c.bf16 %v915, %v916
    %v927 = vpack.c.bf16 %v900, %v899
    %v928 = vpack.c.bf16 %v902, %v901
    %v929 = vpack.c.bf16 %v904, %v903
    %v930 = vpack.c.bf16 %v906, %v905
    %v931 = vrot.slane %v899, 1
    %v932 = vrot.slane %v900, 1
    %v933 = vrot.slane %v901, 1
    %v934 = vrot.slane %v902, 1
    %v935 = vrot.slane %v903, 1
    %v936 = vrot.slane %v904, 1
    %v937 = vrot.slane %v905, 1
    %v938 = vrot.slane %v906, 1
    %v939 = vsel %vm475, %v937, %v938
    %v940 = vsel %vm475, %v936, %v937
    %v941 = vsel %vm475, %v935, %v936
    %v942 = vsel %vm475, %v934, %v935
    %v943 = vsel %vm475, %v933, %v934
    %v944 = vsel %vm475, %v932, %v933
    %v945 = vsel %vm475, %v931, %v932
    %v946 = vsel %vm475, %v938, %v931
    %v947 = vpack.c.bf16 %v944, %v945
    %v948 = vpack.c.bf16 %v942, %v943
    %v949 = vpack.c.bf16 %v940, %v941
    %v950 = vpack.c.bf16 %v946, %v939
    %v951 = vld [vmem:[#allocation3 + $0xd8] sm:$0xf]
    %v952 = vld [vmem:[#allocation3 + $0xdc] sm:$0xf]
    %v953 = vld [vmem:[#allocation3 + $0xe0] sm:$0xf]
    %v954 = vld [vmem:[#allocation3 + $0xe4] sm:$0xf]
    %v955 = vld [vmem:[#allocation3 + $0xe8] sm:$0xf]
    %v956 = vld [vmem:[#allocation3 + $0xec] sm:$0xf]
    %v957 = vld [vmem:[#allocation3 + $0xf0] sm:$0xf]
    %v958 = vld [vmem:[#allocation3 + $0xf4] sm:$0xf]
    %v959 = vld [vmem:[#allocation3 + $0xf8] sm:$0xf]
    %v960 = vld [vmem:[#allocation3 + $0xfc] sm:$0xf]
    %v961 = vld [vmem:[#allocation3 + $0x100] sm:$0xf]
    %v962 = vld [vmem:[#allocation3 + $0x104] sm:$0xf]
    %v963 = vld [vmem:[#allocation3 + $0x108] sm:$0xf]
    %v964 = vld [vmem:[#allocation3 + $0x10c] sm:$0xf]
    %v965 = vld [vmem:[#allocation3 + $0x110] sm:$0xf]
    %v966 = vld [vmem:[#allocation3 + $0x114] sm:$0xf]
    %v967 = vld [vmem:[#allocation3 + $0x118] sm:$0xf]
    %v968 = vld [vmem:[#allocation3 + $0x11c] sm:$0xf]
    %v969 = vld [vmem:[#allocation3 + $0x120] sm:$0xf]
    %v970 = vld [vmem:[#allocation3 + $0x124] sm:$0xf]
    %v971 = vld [vmem:[#allocation3 + $0x128] sm:$0xf]
    %v972 = vld [vmem:[#allocation3 + $0x12c] sm:$0xf]
    %v973 = vld [vmem:[#allocation3 + $0x130] sm:$0xf]
    %v974 = vld [vmem:[#allocation3 + $0x134] sm:$0xf]
    %v975 = vld [vmem:[#allocation3 + $0x138] sm:$0xf]
    %v976 = vld [vmem:[#allocation3 + $0x13c] sm:$0xf]
    %v977 = vld [vmem:[#allocation3 + $0x140] sm:$0xf]
    %v978 = vld [vmem:[#allocation3 + $0x144] sm:$0xf]
    %v979 = vld [vmem:[#allocation3 + $0x148] sm:$0xf]
    %v980 = vld [vmem:[#allocation3 + $0x14c] sm:$0xf]
    %v981 = vld [vmem:[#allocation3 + $0x150] sm:$0xf]
    %v982 = vld [vmem:[#allocation3 + $0x154] sm:$0xf]
    %v983 = vld [vmem:[#allocation3 + $0x158] sm:$0xf]
    %v984 = vld [vmem:[#allocation3 + $0x15c] sm:$0xf]
    %v985 = vld [vmem:[#allocation3 + $0x160] sm:$0xf]
    %v986 = vld [vmem:[#allocation3 + $0x164] sm:$0xf]
    %v987 = vld [vmem:[#allocation3 + $0x168] sm:$0xf]
    %v988 = vld [vmem:[#allocation3 + $0x16c] sm:$0xf]
    %v989 = vld [vmem:[#allocation3 + $0x170] sm:$0xf]
    %v990 = vld [vmem:[#allocation3 + $0x174] sm:$0xf]
    %v991 = vld [vmem:[#allocation3 + $0x178] sm:$0xf]
    %v992 = vld [vmem:[#allocation3 + $0x17c] sm:$0xf]
    %v993 = vld [vmem:[#allocation3 + $0x180] sm:$0xf]
    %v994 = vld [vmem:[#allocation3 + $0x184] sm:$0xf]
    %v995 = vld [vmem:[#allocation3 + $0x188] sm:$0xf]
    %v996 = vld [vmem:[#allocation3 + $0x18c] sm:$0xf]
    %v997 = vld [vmem:[#allocation3 + $0x190] sm:$0xf]
    %v998 = vld [vmem:[#allocation3 + $0x194] sm:$0xf]
    %v999 = vlaneseq
    %v1000 = vshrl.u32 %v999, 7
    %v1001 = vsub.s32 2, %v1000
    %v1002 = vrot.slane %v492, %v1001
    %v1051 = vunpack.c.l.b16 %v951
    %v1052 = vunpack.c.l.b16 %v952
    %v1053 = vunpack.c.l.b16 %v953
    %v1054 = vunpack.c.l.b16 %v954
    %v1055 = vunpack.c.l.b16 %v955
    %v1056 = vunpack.c.l.b16 %v956
    %v1057 = vunpack.c.l.b16 %v957
    %v1058 = vunpack.c.l.b16 %v958
    %v1059 = vunpack.c.l.b16 %v959
    %v1060 = vunpack.c.l.b16 %v960
    %v1061 = vunpack.c.l.b16 %v961
    %v1062 = vunpack.c.l.b16 %v962
    %v1063 = vunpack.c.l.b16 %v963
    %v1064 = vunpack.c.l.b16 %v964
    %v1065 = vunpack.c.l.b16 %v965
    %v1066 = vunpack.c.l.b16 %v966
    %v1067 = vunpack.c.l.b16 %v967
    %v1068 = vunpack.c.l.b16 %v968
    %v1069 = vunpack.c.l.b16 %v969
    %v1070 = vunpack.c.l.b16 %v970
    %v1071 = vunpack.c.l.b16 %v971
    %v1072 = vunpack.c.l.b16 %v972
    %v1073 = vunpack.c.l.b16 %v973
    %v1074 = vunpack.c.l.b16 %v974
    %v1075 = vunpack.c.l.b16 %v975
    %v1076 = vunpack.c.l.b16 %v976
    %v1077 = vunpack.c.l.b16 %v977
    %v1078 = vunpack.c.l.b16 %v978
    %v1079 = vunpack.c.l.b16 %v979
    %v1080 = vunpack.c.l.b16 %v980
    %v1081 = vunpack.c.l.b16 %v981
    %v1082 = vunpack.c.l.b16 %v982
    %v1083 = vunpack.c.l.b16 %v983
    %v1084 = vunpack.c.l.b16 %v984
    %v1085 = vunpack.c.l.b16 %v985
    %v1086 = vunpack.c.l.b16 %v986
    %v1087 = vunpack.c.l.b16 %v987
    %v1088 = vunpack.c.l.b16 %v988
    %v1089 = vunpack.c.l.b16 %v989
    %v1090 = vunpack.c.l.b16 %v990
    %v1091 = vunpack.c.l.b16 %v991
    %v1092 = vunpack.c.l.b16 %v992
    %v1093 = vunpack.c.l.b16 %v993
    %v1094 = vunpack.c.l.b16 %v994
    %v1095 = vunpack.c.l.b16 %v995
    %v1096 = vunpack.c.l.b16 %v996
    %v1097 = vunpack.c.l.b16 %v997
    %v1098 = vunpack.c.l.b16 %v998
    %v1099 = vpack.c.b16 %v1052, %v1051
    %v1100 = vpack.c.b16 %v1054, %v1053
    %v1101 = vpack.c.b16 %v1056, %v1055
    %v1102 = vpack.c.b16 %v1058, %v1057
    %v1103 = vpack.c.b16 %v1060, %v1059
    %v1104 = vpack.c.b16 %v1062, %v1061
    %v1105 = vpack.c.b16 %v1064, %v1063
    %v1106 = vpack.c.b16 %v1066, %v1065
    %v1107 = vpack.c.b16 %v1068, %v1067
    %v1108 = vpack.c.b16 %v1070, %v1069
    %v1109 = vpack.c.b16 %v1072, %v1071
    %v1110 = vpack.c.b16 %v1074, %v1073
    %v1111 = vpack.c.b16 %v1076, %v1075
    %v1112 = vpack.c.b16 %v1078, %v1077
    %v1113 = vpack.c.b16 %v1080, %v1079
    %v1114 = vpack.c.b16 %v1082, %v1081
    %v1115 = vpack.c.b16 %v1084, %v1083
    %v1116 = vpack.c.b16 %v1086, %v1085
    %v1117 = vpack.c.b16 %v1088, %v1087
    %v1118 = vpack.c.b16 %v1090, %v1089
    %v1119 = vpack.c.b16 %v1092, %v1091
    %v1120 = vpack.c.b16 %v1094, %v1093
    %v1121 = vpack.c.b16 %v1096, %v1095
    %v1122 = vpack.c.b16 %v1098, %v1097
    %1147 = vmatprep.subr.bf16.mxu0 0
    %1148 = vmatpush1.bf16.msra.mxu0 %v1106
    %1149 = vmatprep.subr.bf16.mxu0 0
    %1150 = vmatpush1.bf16.msra.mxu0 %v1105
    %1151 = vmatprep.subr.bf16.mxu0 0
    %1152 = vmatpush1.bf16.msra.mxu0 %v1104
    %1153 = vmatprep.subr.bf16.mxu0 0
    %1154 = vmatpush1.bf16.msra.mxu0 %v1103
    %1155 = vmatprep.subr.bf16.mxu0 0
    %1156 = vmatpush1.bf16.msra.mxu0 %v1102
    %1157 = vmatprep.subr.bf16.mxu0 0
    %1158 = vmatpush1.bf16.msra.mxu0 %v1101
    %1159 = vmatprep.subr.bf16.mxu0 0
    %1160 = vmatpush1.bf16.msra.mxu0 %v1100
    %1161 = vmatprep.subr.bf16.mxu0 0
    %1162 = vmatpush1.bf16.msra.mxu0 %v1099
    %1163 = vmatprep.subr.bf16.mxu0 0
    %1164 = vmatpush2.bf16.msra.mxu0 %v1114
    %1165 = vmatprep.subr.bf16.mxu0 0
    %1166 = vmatpush2.bf16.msra.mxu0 %v1113
    %1167 = vmatprep.subr.bf16.mxu0 0
    %1168 = vmatpush2.bf16.msra.mxu0 %v1112
    %1169 = vmatprep.subr.bf16.mxu0 0
    %1170 = vmatpush2.bf16.msra.mxu0 %v1111
    %1171 = vmatprep.subr.bf16.mxu0 0
    %1172 = vmatpush2.bf16.msra.mxu0 %v1110
    %1173 = vmatprep.subr.bf16.mxu0 0
    %1174 = vmatpush2.bf16.msra.mxu0 %v1109
    %1175 = vmatprep.subr.bf16.mxu0 0
    %1176 = vmatpush2.bf16.msra.mxu0 %v1108
    %1177 = vmatprep.subr.bf16.mxu0 0
    %1178 = vmatpush2.bf16.msra.mxu0 %v1107
    %1179 = vmatprep.mubr.bf16.mxu0 %v927
    %1180 = vmatmul.mubr.bf16.gmra.mxu0 %v923
    %v1181 = vpop.f32.mrf.mxu0
    %v1182 = vadd.f32 %v1002, %v1181
    %v1183 = vpop.f32.mrf.mxu0
    %v1184 = vpop.f32.mrf.mxu0
    %v1185 = vadd.f32 %v1002, %v1184
    %v1186 = vpop.f32.mrf.mxu0
    %1187 = vmatprep.mubr.bf16.mxu0 %v928
    %1188 = vmatmul.mubr.bf16.gmra.mxu0 %v924
    %v1189 = vpop.f32.mrf.mxu0
    %v1190 = vadd.f32 %v1002, %v1189
    %v1191 = vpop.f32.mrf.mxu0
    %v1192 = vpop.f32.mrf.mxu0
    %v1193 = vadd.f32 %v1002, %v1192
    %v1194 = vpop.f32.mrf.mxu0
    %1195 = vmatprep.mubr.bf16.mxu0 %v929
    %1196 = vmatmul.mubr.bf16.gmra.mxu0 %v925
    %v1197 = vpop.f32.mrf.mxu0
    %v1198 = vadd.f32 %v1002, %v1197
    %v1199 = vpop.f32.mrf.mxu0
    %v1200 = vpop.f32.mrf.mxu0
    %v1201 = vadd.f32 %v1002, %v1200
    %v1202 = vpop.f32.mrf.mxu0
    %1203 = vmatprep.mubr.bf16.mxu0 %v930
    %1204 = vmatmul.mubr.bf16.gmra.mxu0 %v926
    %v1205 = vpop.f32.mrf.mxu0
    %v1206 = vadd.f32 %v1002, %v1205
    %v1207 = vpop.f32.mrf.mxu0
    %v1208 = vpop.f32.mrf.mxu0
    %v1209 = vadd.f32 %v1002, %v1208
    %v1210 = vpop.f32.mrf.mxu0
    %1211 = vdwg.mxu0
    %1212 = vmatprep.subr.bf16.mxu0 0
    %1213 = vmatpush1.bf16.msra.mxu0 %v1122
    %1214 = vmatprep.subr.bf16.mxu0 0
    %1215 = vmatpush1.bf16.msra.mxu0 %v1121
    %1216 = vmatprep.subr.bf16.mxu0 0
    %1217 = vmatpush1.bf16.msra.mxu0 %v1120
    %1218 = vmatprep.subr.bf16.mxu0 0
    %1219 = vmatpush1.bf16.msra.mxu0 %v1119
    %1220 = vmatprep.subr.bf16.mxu0 0
    %1221 = vmatpush1.bf16.msra.mxu0 %v1118
    %1222 = vmatprep.subr.bf16.mxu0 0
    %1223 = vmatpush1.bf16.msra.mxu0 %v1117
    %1224 = vmatprep.subr.bf16.mxu0 0
    %1225 = vmatpush1.bf16.msra.mxu0 %v1116
    %1226 = vmatprep.subr.bf16.mxu0 0
    %1227 = vmatpush1.bf16.msra.mxu0 %v1115
    %1228 = vmatprep.subr.bf16.mxu0 0
    %1229 = vmatpush2.bf16.msra.mxu0 0
    %1230 = vmatprep.subr.bf16.mxu0 0
    %1231 = vmatpush2.bf16.msra.mxu0 0
    %1232 = vmatprep.subr.bf16.mxu0 0
    %1233 = vmatpush2.bf16.msra.mxu0 0
    %1234 = vmatprep.subr.bf16.mxu0 0
    %1235 = vmatpush2.bf16.msra.mxu0 0
    %1236 = vmatprep.subr.bf16.mxu0 0
    %1237 = vmatpush2.bf16.msra.mxu0 0
    %1238 = vmatprep.subr.bf16.mxu0 0
    %1239 = vmatpush2.bf16.msra.mxu0 0
    %1240 = vmatprep.subr.bf16.mxu0 0
    %1241 = vmatpush2.bf16.msra.mxu0 0
    %1242 = vmatprep.subr.bf16.mxu0 0
    %1243 = vmatpush2.bf16.msra.mxu0 0
    %1244 = vmatprep.mubr.bf16.mxu0 0
    %1245 = vmatmul.mubr.bf16.gmra.mxu0 %v947
    %v1246 = vpop.f32.mrf.mxu0
    %v1247 = vadd.f32 %v1182, %v1246
    %v1248 = vpop.f32.mrf.mxu0
    %v1249 = vpop.f32.mrf.mxu0
    %v1250 = vadd.f32 %v1185, %v1249
    %v1251 = vpop.f32.mrf.mxu0
    %1252 = vmatprep.mubr.bf16.mxu0 0
    %1253 = vmatmul.mubr.bf16.gmra.mxu0 %v948
    %v1254 = vpop.f32.mrf.mxu0
    %v1255 = vadd.f32 %v1190, %v1254
    %v1256 = vpop.f32.mrf.mxu0
    %v1257 = vpop.f32.mrf.mxu0
    %v1258 = vadd.f32 %v1193, %v1257
    %v1259 = vpop.f32.mrf.mxu0
    %1260 = vmatprep.mubr.bf16.mxu0 0
    %1261 = vmatmul.mubr.bf16.gmra.mxu0 %v949
    %v1262 = vpop.f32.mrf.mxu0
    %v1263 = vadd.f32 %v1198, %v1262
    %v1264 = vpop.f32.mrf.mxu0
    %v1265 = vpop.f32.mrf.mxu0
    %v1266 = vadd.f32 %v1201, %v1265
    %v1267 = vpop.f32.mrf.mxu0
    %1268 = vmatprep.mubr.bf16.mxu0 0
    %1269 = vmatmul.mubr.bf16.gmra.mxu0 %v950
    %v1270 = vpop.f32.mrf.mxu0
    %v1271 = vadd.f32 %v1206, %v1270
    %v1272 = vpop.f32.mrf.mxu0
    %v1273 = vpop.f32.mrf.mxu0
    %v1274 = vadd.f32 %v1209, %v1273
    %v1275 = vpop.f32.mrf.mxu0
    %1276 = vdwg.mxu0
    %v1277 = vadd.f32 %v1247, %v513
    %v1278 = vadd.f32 %v1250, %v514
    %v1279 = vadd.f32 %v1255, %v515
    %v1280 = vadd.f32 %v1258, %v516
    %v1281 = vadd.f32 %v1263, %v517
    %v1282 = vadd.f32 %v1266, %v518
    %v1283 = vadd.f32 %v1271, %v519
    %v1284 = vadd.f32 %v1274, %v520
    %v1285 = vmax.f32 %v1277, 0.0
    %v1286 = vmax.f32 %v1278, 0.0
    %v1287 = vmax.f32 %v1279, 0.0
    %v1288 = vmax.f32 %v1280, 0.0
    %v1289 = vmax.f32 %v1281, 0.0
    %v1290 = vmax.f32 %v1282, 0.0
    %v1291 = vmax.f32 %v1283, 0.0
    %v1292 = vmax.f32 %v1284, 0.0
    %v1293 = vmul.f32 %v1285, %v173
    %v1294 = vmul.f32 %v1286, %v174
    %v1295 = vmul.f32 %v1287, %v175
    %v1296 = vmul.f32 %v1288, %v176
    %v1297 = vmul.f32 %v1289, %v177
    %v1298 = vmul.f32 %v1290, %v178
    %v1299 = vmul.f32 %v1291, %v179
    %v1300 = vmul.f32 %v1292, %v180
    %v1301 = vadd.f32 %v1293, %v1294
    %v1302 = vadd.f32 %v1301, %v1295
    %v1303 = vadd.f32 %v1302, %v1296
    %v1304 = vrot.slane %v1303, 4
    %v1305 = vadd.f32 %v1303, %v1304
    %v1306 = vrot.slane %v1305, 2
    %v1307 = vadd.f32 %v1305, %v1306
    %v1308 = vrot.slane %v1307, 1
    %v1309 = vadd.f32 %v1307, %v1308
    %v1310 = vadd.f32 %v1297, %v1298
    %v1311 = vadd.f32 %v1310, %v1299
    %v1312 = vadd.f32 %v1311, %v1300
    %v1313 = vrot.slane %v1312, 4
    %v1314 = vadd.f32 %v1312, %v1313
    %v1315 = vrot.slane %v1314, 2
    %v1316 = vadd.f32 %v1314, %v1315
    %v1317 = vrot.slane %v1316, 1
    %v1318 = vadd.f32 %v1316, %v1317
    %vm1319 = vcmask 1040384
    %v1320 = vsel %vm1319, %v1309, %v1318
    %v1321 = vld [vmem:[#allocation3 + $0x19c] sm:$0xf]
    %v1322 = vld [vmem:[#allocation3 + $0x1a0] sm:$0xf]
    %v1323 = vld [vmem:[#allocation3 + $0x1a4] sm:$0xf]
    %v1324 = vld [vmem:[#allocation3 + $0x1a8] sm:$0xf]
    %v1325 = vld [vmem:[#allocation3 + $0x1ac] sm:$0xf]
    %v1326 = vld [vmem:[#allocation3 + $0x1b0] sm:$0xf]
    %v1327 = vld [vmem:[#allocation3 + $0x1b4] sm:$0xf]
    %v1328 = vld [vmem:[#allocation3 + $0x1b8] sm:$0xf]
    %v1329 = vld [vmem:[#allocation3 + $0x1bc] sm:$0xf]
    %v1330 = vld [vmem:[#allocation3 + $0x1c0] sm:$0xf]
    %v1331 = vld [vmem:[#allocation3 + $0x1c4] sm:$0xf]
    %v1332 = vld [vmem:[#allocation3 + $0x1c8] sm:$0xf]
    %v1333 = vld [vmem:[#allocation3 + $0x1cc] sm:$0xf]
    %v1334 = vld [vmem:[#allocation3 + $0x1d0] sm:$0xf]
    %v1335 = vld [vmem:[#allocation3 + $0x1d4] sm:$0xf]
    %v1336 = vld [vmem:[#allocation3 + $0x1d8] sm:$0xf]
    %v1337 = vpack.c.bf16 %v1320, %v1320
    %v1338 = vlaneseq
    %v1339 = vshrl.u32 %v1338, 7
    %v1340 = vsub.s32 3, %v1339
    %v1341 = vrot.slane %v492, %v1340
    %v1358 = vunpack.c.l.b16 %v1321
    %v1359 = vunpack.c.l.b16 %v1322
    %v1360 = vunpack.c.l.b16 %v1323
    %v1361 = vunpack.c.l.b16 %v1324
    %v1362 = vunpack.c.l.b16 %v1325
    %v1363 = vunpack.c.l.b16 %v1326
    %v1364 = vunpack.c.l.b16 %v1327
    %v1365 = vunpack.c.l.b16 %v1328
    %v1366 = vunpack.c.l.b16 %v1329
    %v1367 = vunpack.c.l.b16 %v1330
    %v1368 = vunpack.c.l.b16 %v1331
    %v1369 = vunpack.c.l.b16 %v1332
    %v1370 = vunpack.c.l.b16 %v1333
    %v1371 = vunpack.c.l.b16 %v1334
    %v1372 = vunpack.c.l.b16 %v1335
    %v1373 = vunpack.c.l.b16 %v1336
    %v1374 = vpack.c.b16 %v1359, %v1358
    %v1375 = vpack.c.b16 %v1361, %v1360
    %v1376 = vpack.c.b16 %v1363, %v1362
    %v1377 = vpack.c.b16 %v1365, %v1364
    %v1378 = vpack.c.b16 %v1367, %v1366
    %v1379 = vpack.c.b16 %v1369, %v1368
    %v1380 = vpack.c.b16 %v1371, %v1370
    %v1381 = vpack.c.b16 %v1373, %v1372
    %1390 = vmatprep.subr.bf16.mxu0 0
    %1391 = vmatpush1.bf16.msra.mxu0 %v1381
    %1392 = vmatprep.subr.bf16.mxu0 0
    %1393 = vmatpush1.bf16.msra.mxu0 %v1380
    %1394 = vmatprep.subr.bf16.mxu0 0
    %1395 = vmatpush1.bf16.msra.mxu0 %v1379
    %1396 = vmatprep.subr.bf16.mxu0 0
    %1397 = vmatpush1.bf16.msra.mxu0 %v1378
    %1398 = vmatprep.subr.bf16.mxu0 0
    %1399 = vmatpush1.bf16.msra.mxu0 %v1377
    %1400 = vmatprep.subr.bf16.mxu0 0
    %1401 = vmatpush1.bf16.msra.mxu0 %v1376
    %1402 = vmatprep.subr.bf16.mxu0 0
    %1403 = vmatpush1.bf16.msra.mxu0 %v1375
    %1404 = vmatprep.subr.bf16.mxu0 0
    %1405 = vmatpush1.bf16.msra.mxu0 %v1374
    %1406 = vmatprep.subr.bf16.mxu0 0
    %1407 = vmatpush2.bf16.msra.mxu0 0
    %1408 = vmatprep.subr.bf16.mxu0 0
    %1409 = vmatpush2.bf16.msra.mxu0 0
    %1410 = vmatprep.subr.bf16.mxu0 0
    %1411 = vmatpush2.bf16.msra.mxu0 0
    %1412 = vmatprep.subr.bf16.mxu0 0
    %1413 = vmatpush2.bf16.msra.mxu0 0
    %1414 = vmatprep.subr.bf16.mxu0 0
    %1415 = vmatpush2.bf16.msra.mxu0 0
    %1416 = vmatprep.subr.bf16.mxu0 0
    %1417 = vmatpush2.bf16.msra.mxu0 0
    %1418 = vmatprep.subr.bf16.mxu0 0
    %1419 = vmatpush2.bf16.msra.mxu0 0
    %1420 = vmatprep.subr.bf16.mxu0 0
    %1421 = vmatpush2.bf16.msra.mxu0 0
    %1422 = vmatprep.mubr.bf16.mxu0 0
    %1423 = vmatmul.mubr.bf16.gmra.mxu0 %v1337
    %v1424 = vpop.f32.mrf.mxu0
    %v1425 = vadd.f32 %v1341, %v1424
    %v1426 = vpop.f32.mrf.mxu0
    %v1427 = vpop.f32.mrf.mxu0
    %v1428 = vpop.f32.mrf.mxu0
    %1429 = vdwg.mxu0
    %v1430 = vmax.f32 %v1425, 0.0
    %v1431 = vld [vmem:[%s1] sm:$0x3]
    %v1432 = vpack.c.bf16 %v1431, %v1431
    %v1433 = vld [vmem:[%s3] sm:$0xff]
    %v1434 = vld [vmem:[%s3 + $0x8] sm:$0xf]
    %v1435 = vld [vmem:[%s3 + $0xc] sm:$0xff]
    %v1436 = vld [vmem:[%s3 + $0x14] sm:$0xf]
    %v1437 = vld [vmem:[%s3 + $0x18] sm:$0x11]
    %v1438 = vld [vmem:[%s3 + $0x20] sm:$0x1]
    %v1439 = vunpack.c.l.bf16 %v1437
    %v1440 = vunpack.c.h.bf16 %v1437
    %v1441 = vunpack.c.l.bf16 %v1438
    %v1442 = vlaneseq
    %v1443 = vshrl.u32 %v1442, 7
    %v1444 = vsub.s32 0, %v1443
    %v1445 = vrot.slane %v1439, %v1444
    %v1446 = vlaneseq
    %v1447 = vshrl.u32 %v1446, 7
    %v1448 = vsub.s32 0, %v1447
    %v1449 = vrot.slane %v1440, %v1448
    %v1450 = vlaneseq
    %v1451 = vshrl.u32 %v1450, 7
    %v1452 = vsub.s32 0, %v1451
    %v1453 = vrot.slane %v1441, %v1452
    %v1458 = vunpack.c.l.b16 %v1433
    %v1459 = vunpack.c.h.b16 %v1433
    %v1460 = vunpack.c.l.b16 %v1434
    %v1461 = vunpack.c.l.b16 %v1435
    %v1462 = vunpack.c.h.b16 %v1435
    %v1463 = vunpack.c.l.b16 %v1436
    %v1464 = vpack.c.b16 %v1461, %v1458
    %v1465 = vpack.c.b16 %v1462, %v1459
    %v1466 = vpack.c.b16 %v1463, %v1460
    %v1471 = vsel %vm181, %v1432, 0
    %1473 = vmatprep.subr.bf16.mxu0 0
    %1474 = vmatpush1.bf16.msra.mxu0 0
    %1475 = vmatprep.subr.bf16.mxu0 0
    %1476 = vmatpush1.bf16.msra.mxu0 0
    %1477 = vmatprep.subr.bf16.mxu0 0
    %1478 = vmatpush1.bf16.msra.mxu0 0
    %1479 = vmatprep.subr.bf16.mxu0 0
    %1480 = vmatpush1.bf16.msra.mxu0 0
    %1481 = vmatprep.subr.bf16.mxu0 0
    %1482 = vmatpush1.bf16.msra.mxu0 0
    %1483 = vmatprep.subr.bf16.mxu0 0
    %1484 = vmatpush1.bf16.msra.mxu0 0
    %1485 = vmatprep.subr.bf16.mxu0 0
    %1486 = vmatpush1.bf16.msra.mxu0 0
    %1487 = vmatprep.subr.bf16.mxu0 %v1465
    %1488 = vmatpush1.bf16.msra.mxu0 %v1464
    %1489 = vmatprep.subr.bf16.mxu0 0
    %1490 = vmatpush2.bf16.msra.mxu0 0
    %1491 = vmatprep.subr.bf16.mxu0 0
    %1492 = vmatpush2.bf16.msra.mxu0 0
    %1493 = vmatprep.subr.bf16.mxu0 0
    %1494 = vmatpush2.bf16.msra.mxu0 0
    %1495 = vmatprep.subr.bf16.mxu0 0
    %1496 = vmatpush2.bf16.msra.mxu0 0
    %1497 = vmatprep.subr.bf16.mxu0 0
    %1498 = vmatpush2.bf16.msra.mxu0 0
    %1499 = vmatprep.subr.bf16.mxu0 0
    %1500 = vmatpush2.bf16.msra.mxu0 0
    %1501 = vmatprep.subr.bf16.mxu0 0
    %1502 = vmatpush2.bf16.msra.mxu0 0
    %1503 = vmatprep.subr.bf16.mxu0 0
    %1504 = vmatpush2.bf16.msra.mxu0 0
    %1505 = vmatprep.mubr.bf16.mxu0 0
    %1506 = vmatmul.mubr.bf16.gmra.mxu0 %v1471
    %v1507 = vpop.f32.mrf.mxu0
    %v1508 = vadd.f32 %v1445, %v1507
    %v1509 = vpop.f32.mrf.mxu0
    %v1510 = vadd.f32 %v1449, %v1509
    %v1511 = vpop.f32.mrf.mxu0
    %v1512 = vpop.f32.mrf.mxu0
    %1513 = vdwg.mxu0
    %1514 = vmatprep.subr.bf16.mxu0 0
    %1515 = vmatpush1.bf16.msra.mxu0 0
    %1516 = vmatprep.subr.bf16.mxu0 0
    %1517 = vmatpush1.bf16.msra.mxu0 0
    %1518 = vmatprep.subr.bf16.mxu0 0
    %1519 = vmatpush1.bf16.msra.mxu0 0
    %1520 = vmatprep.subr.bf16.mxu0 0
    %1521 = vmatpush1.bf16.msra.mxu0 0
    %1522 = vmatprep.subr.bf16.mxu0 0
    %1523 = vmatpush1.bf16.msra.mxu0 0
    %1524 = vmatprep.subr.bf16.mxu0 0
    %1525 = vmatpush1.bf16.msra.mxu0 0
    %1526 = vmatprep.subr.bf16.mxu0 0
    %1527 = vmatpush1.bf16.msra.mxu0 0
    %1528 = vmatprep.subr.bf16.mxu0 0
    %1529 = vmatpush1.bf16.msra.mxu0 %v1466
    %1530 = vmatprep.subr.bf16.mxu0 0
    %1531 = vmatpush2.bf16.msra.mxu0 0
    %1532 = vmatprep.subr.bf16.mxu0 0
    %1533 = vmatpush2.bf16.msra.mxu0 0
    %1534 = vmatprep.subr.bf16.mxu0 0
    %1535 = vmatpush2.bf16.msra.mxu0 0
    %1536 = vmatprep.subr.bf16.mxu0 0
    %1537 = vmatpush2.bf16.msra.mxu0 0
    %1538 = vmatprep.subr.bf16.mxu0 0
    %1539 = vmatpush2.bf16.msra.mxu0 0
    %1540 = vmatprep.subr.bf16.mxu0 0
    %1541 = vmatpush2.bf16.msra.mxu0 0
    %1542 = vmatprep.subr.bf16.mxu0 0
    %1543 = vmatpush2.bf16.msra.mxu0 0
    %1544 = vmatprep.subr.bf16.mxu0 0
    %1545 = vmatpush2.bf16.msra.mxu0 0
    %1546 = vmatprep.mubr.bf16.mxu0 0
    %1547 = vmatmul.mubr.bf16.gmra.mxu0 %v1471
    %v1548 = vpop.f32.mrf.mxu0
    %v1549 = vadd.f32 %v1453, %v1548
    %v1550 = vpop.f32.mrf.mxu0
    %v1551 = vpop.f32.mrf.mxu0
    %v1552 = vpop.f32.mrf.mxu0
    %1553 = vdwg.mxu0
    %1555 = vset.pattern.permute.xlu0 0
    %1556 = vperm.xlu0 %1555, %v1430
    %v1557 = vpop.permute.xlu0 %1556
    %v1559 = vmul.f32 %v1557, %v1508
    %1561 = vrot.lane.b32.xlu0 %v1559, 96
    %v1562 = vpop.permute.xlu0 %1561
    %v1564 = vadd.f32 %v1508, %v1562
    %1565 = vset.pattern.permute.xlu0 1
    %1566 = vperm.xlu0 %1565, %v1430
    %v1567 = vpop.permute.xlu0 %1566
    %v1569 = vmul.f32 %v1567, %v1508
    %1571 = vrot.lane.b32.xlu0 %v1569, 64
    %v1572 = vpop.permute.xlu0 %1571
    %v1574 = vadd.f32 %v1564, %v1572
    %1575 = vset.pattern.permute.xlu0 2
    %1576 = vperm.xlu0 %1575, %v1430
    %v1577 = vpop.permute.xlu0 %1576
    %v1579 = vmul.f32 %v1577, %v1508
    %1581 = vrot.lane.b32.xlu0 %v1579, 32
    %v1582 = vpop.permute.xlu0 %1581
    %v1584 = vadd.f32 %v1574, %v1582
    %1585 = vset.pattern.permute.xlu0 3
    %1586 = vperm.xlu0 %1585, %v1430
    %v1587 = vpop.permute.xlu0 %1586
    %v1589 = vmul.f32 %v1587, %v1510
    %v1590 = vadd.f32 %v1584, %v1589
    %1591 = vset.pattern.permute.xlu0 4
    %1592 = vperm.xlu0 %1591, %v1430
    %v1593 = vpop.permute.xlu0 %1592
    %v1595 = vmul.f32 %v1593, %v1510
    %1597 = vrot.lane.b32.xlu0 %v1595, 96
    %v1598 = vpop.permute.xlu0 %1597
    %v1600 = vadd.f32 %v1590, %v1598
    %1601 = vset.pattern.permute.xlu0 5
    %1602 = vperm.xlu0 %1601, %v1430
    %v1603 = vpop.permute.xlu0 %1602
    %v1605 = vmul.f32 %v1603, %v1510
    %1607 = vrot.lane.b32.xlu0 %v1605, 64
    %v1608 = vpop.permute.xlu0 %1607
    %v1610 = vadd.f32 %v1600, %v1608
    %1611 = vset.pattern.permute.xlu0 6
    %1612 = vperm.xlu0 %1611, %v1430
    %v1613 = vpop.permute.xlu0 %1612
    %v1615 = vmul.f32 %v1613, %v1510
    %1617 = vrot.lane.b32.xlu0 %v1615, 32
    %v1618 = vpop.permute.xlu0 %1617
    %v1620 = vadd.f32 %v1610, %v1618
    %1621 = vset.pattern.permute.xlu0 7
    %1622 = vperm.xlu0 %1621, %v1430
    %v1623 = vpop.permute.xlu0 %1622
    %v1625 = vmul.f32 %v1623, %v1549
    %v1626 = vadd.f32 %v1620, %v1625
    %v1627 = vld [vmem:[%s3 + $0x18] sm:$0x1]
    %v1628 = vunpack.c.l.bf16 %v1627
    %v1629 = vlaneseq
    %v1630 = vshrl.u32 %v1629, 7
    %v1631 = vsub.s32 1, %v1630
    %v1632 = vrot.slane %v1628, %v1631
    %v1633 = vadd.f32 %v1626, %v1632
    %v1634 = vmax.f32 %v1633, 0.0
    %v1635 = vld [vmem:[%s4] sm:$0xff]
    %v1636 = vld [vmem:[%s4 + $0x8] sm:$0xff]
    %v1637 = vld [vmem:[%s4 + $0x10] sm:$0xff]
    %v1638 = vld [vmem:[%s4 + $0x18] sm:$0xff]
    %v1639 = vld [vmem:[%s4 + $0x20] sm:$0x1]
    %v1640 = vlaneseq
    %v1641 = vshrl.u32 %v1640, 7
    %v1642 = vsub.s32 0, %v1641
    %v1643 = vrot.slane %v1639, %v1642
    %vm1644 = vcmask 261120
    %v1646 = vsel %vm1644, %v1634, 0
    %1648 = vmatprep.subr.mxu0 0.0
    %1649 = vmatpush1.msra.mxu0 0.0
    %1650 = vmatprep.subr.mxu0 0.0
    %1651 = vmatpush1.msra.mxu0 0.0
    %1652 = vmatprep.subr.mxu0 0.0
    %1653 = vmatpush1.msra.mxu0 0.0
    %1654 = vmatprep.subr.mxu0 0.0
    %1655 = vmatpush1.msra.mxu0 0.0
    %1656 = vmatprep.subr.mxu0 0.0
    %1657 = vmatpush1.msra.mxu0 0.0
    %1658 = vmatprep.subr.mxu0 0.0
    %1659 = vmatpush1.msra.mxu0 0.0
    %1660 = vmatprep.subr.mxu0 0.0
    %1661 = vmatpush1.msra.mxu0 0.0
    %1662 = vmatprep.subr.mxu0 0.0
    %1663 = vmatpush1.msra.mxu0 0.0
    %1664 = vmatprep.subr.mxu0 0.0
    %1665 = vmatpush1.msra.mxu0 0.0
    %1666 = vmatprep.subr.mxu0 0.0
    %1667 = vmatpush1.msra.mxu0 0.0
    %1668 = vmatprep.subr.mxu0 0.0
    %1669 = vmatpush1.msra.mxu0 0.0
    %1670 = vmatprep.subr.mxu0 0.0
    %1671 = vmatpush1.msra.mxu0 0.0
    %1672 = vmatprep.subr.mxu0 0.0
    %1673 = vmatpush1.msra.mxu0 %v1638
    %1674 = vmatprep.subr.mxu0 0.0
    %1675 = vmatpush1.msra.mxu0 %v1637
    %1676 = vmatprep.subr.mxu0 0.0
    %1677 = vmatpush1.msra.mxu0 %v1636
    %1678 = vmatprep.subr.mxu0 0.0
    %1679 = vmatpush1.msra.mxu0 %v1635
    %1680 = vmatprep.subr.mxu0 0.0
    %1681 = vmatpush2.msra.mxu0 0.0
    %1682 = vmatprep.subr.mxu0 0.0
    %1683 = vmatpush2.msra.mxu0 0.0
    %1684 = vmatprep.subr.mxu0 0.0
    %1685 = vmatpush2.msra.mxu0 0.0
    %1686 = vmatprep.subr.mxu0 0.0
    %1687 = vmatpush2.msra.mxu0 0.0
    %1688 = vmatprep.subr.mxu0 0.0
    %1689 = vmatpush2.msra.mxu0 0.0
    %1690 = vmatprep.subr.mxu0 0.0
    %1691 = vmatpush2.msra.mxu0 0.0
    %1692 = vmatprep.subr.mxu0 0.0
    %1693 = vmatpush2.msra.mxu0 0.0
    %1694 = vmatprep.subr.mxu0 0.0
    %1695 = vmatpush2.msra.mxu0 0.0
    %1696 = vmatprep.subr.mxu0 0.0
    %1697 = vmatpush2.msra.mxu0 0.0
    %1698 = vmatprep.subr.mxu0 0.0
    %1699 = vmatpush2.msra.mxu0 0.0
    %1700 = vmatprep.subr.mxu0 0.0
    %1701 = vmatpush2.msra.mxu0 0.0
    %1702 = vmatprep.subr.mxu0 0.0
    %1703 = vmatpush2.msra.mxu0 0.0
    %1704 = vmatprep.subr.mxu0 0.0
    %1705 = vmatpush2.msra.mxu0 0.0
    %1706 = vmatprep.subr.mxu0 0.0
    %1707 = vmatpush2.msra.mxu0 0.0
    %1708 = vmatprep.subr.mxu0 0.0
    %1709 = vmatpush2.msra.mxu0 0.0
    %1710 = vmatprep.subr.mxu0 0.0
    %1711 = vmatpush2.msra.mxu0 0.0
    %1712 = vmatprep.mubr.f32.mxu0 0.0
    %1713 = vmatmul.mubr.f32.gmra.mxu0 %v1646
    %v1714 = vpop.f32.mrf.mxu0
    %v1715 = vadd.f32 %v1643, %v1714
    %v1716 = vpop.f32.mrf.mxu0
    %1717 = vdwg.mxu0
    %v1718 = vmax.f32 %v1715, 0.0
    %v1719 = vld [vmem:[%s4 + $0x21] sm:$0x1]
    %v1720 = vlaneseq
    %v1721 = vshrl.u32 %v1720, 7
    %v1722 = vsub.s32 0, %v1721
    %v1723 = vrot.slane %v1719, %v1722
    %v1724 = vmul.f32 %v1718, %v1723
    %vm1725 = vcmask 254976
    %v1726 = vsel %vm1725, %v1724, 0.0
    %1727 = vadd.xlane.f32.xlu0 %v1726
    %v1728 = vpop.xlane.xlu0 %1727
    %v1729 = vld [vmem:[%s4 + $0x22] sm:$0x1]
    %v1730 = vlaneseq
    %v1731 = vshrl.u32 %v1730, 7
    %v1732 = vsub.s32 0, %v1731
    %v1733 = vrot.slane %v1729, %v1732
    %v1734 = vadd.f32 %v1728, %v1733
    %v1735 = vxor.u32 %v1734, 2147483648
    %v1736 = vmul.f32 %v1735, 1.442695
    %v1737 = vpow.pop %v1736
    %v1738 = vadd.f32 %v1737, 1.0
    %v1739 = vrcp.pop %v1738
    %v1740 = vmul.f32 1.0, %v1739
    %v1741 = vmul.f32 %v1740, 6.0
    %v1742 = vsub.f32 %v1741, 3.0
    %vm1743 = vcmask 1024
    %1744 = vst.msk [vmem:[%s5] sm:$0x3] %vm1743, %v1742
    // Predicated region
    $region26: #{tfn_model_forward.1} parent=1 // pred_check
      _
    $region27: #{tfn_model_forward.1} parent=1 // pred_check_branch
      %1746 = sbr.rel (0) target = $region29
    $region28: #{tfn_model_forward.1} parent=1 // pred_region
      _
    $region29: #{tfn_model_forward.1} parent=1 // pred_fallthru
      _
    // Predicated region
    $region30: #{tfn_model_forward.1} parent=1 // pred_check
      _
    $region31: #{tfn_model_forward.1} parent=1 // pred_check_branch
      %1748 = sbr.rel (0) target = $region33
    $region32: #{tfn_model_forward.1} parent=1 // pred_region
      _
    $region33: #{tfn_model_forward.1} parent=1 // pred_fallthru
      _
    %1749 = vsyncpa [#allocation4], 1

</llo_original>
